<compile_context>
chip_gen: v7x
topology: tpu7x:2x2x1
jax: 0.10.0
libtpu: 0.0.40
codegen_flags: <defaults>
</compile_context>

<pallas_src>
import jax
import jax.numpy as jnp
from jax.experimental import pallas as pl
from jax.experimental.pallas import tpu as pltpu


# --------------------------- helpers -----------------------------------------

def _round_up(n, m):
    return ((n + m - 1) // m) * m


def _choose_lane_tile(total, per_lane_bytes, budget=6 << 20):
    """Largest multiple-of-128 divisor of `total` whose per-step VMEM cost
    (per_lane_bytes * tile) fits in `budget`. `total` must be a multiple of 128."""
    best = 128
    t = 128
    while t <= total:
        if total % t == 0 and t * per_lane_bytes <= budget:
            best = t
        t += 128
    return best


# --------------------------- spectral mix kernel ------------------------------

def _make_spectral_kernel(cin, cout_p, cout_tile):
    n_chunks = cout_p // cout_tile

    def kernel(xr_ref, xi_ref, wr_ref, wi_ref, or_ref, oi_ref):
        # xr/xi: (1, Cin, TK)   wr/wi: (Cin, Cout_p, TK)   outs: (1, Cout_p, TK)
        bt, _, tk = xr_ref.shape
        for oc in range(n_chunks):
            o0 = oc * cout_tile
            acc_r = jnp.zeros((bt, cout_tile, tk), jnp.float32)
            acc_i = jnp.zeros((bt, cout_tile, tk), jnp.float32)
            if cin <= 16:
                # small Cin: full Python unroll.
                for c in range(cin):
                    xr = xr_ref[:, c:c + 1, :]                    # (1, 1, TK)
                    xi = xi_ref[:, c:c + 1, :]
                    wr = wr_ref[c:c + 1, o0:o0 + cout_tile, :]    # (1, Ct, TK)
                    wi = wi_ref[c:c + 1, o0:o0 + cout_tile, :]
                    # plain complex multiply: 4 mul + 4 add (VALU-friendly).
                    acc_r = acc_r + (xr * wr - xi * wi)
                    acc_i = acc_i + (xr * wi + xi * wr)
            else:
                def body(c, accs):
                    a_r, a_i = accs
                    xr = xr_ref[:, pl.ds(c, 1), :]
                    xi = xi_ref[:, pl.ds(c, 1), :]
                    wr = wr_ref[pl.ds(c, 1), pl.ds(o0, cout_tile), :]
                    wi = wi_ref[pl.ds(c, 1), pl.ds(o0, cout_tile), :]
                    return (a_r + (xr * wr - xi * wi),
                            a_i + (xr * wi + xi * wr))
                acc_r, acc_i = jax.lax.fori_loop(0, cin, body, (acc_r, acc_i),
                                                 unroll=8)
            or_ref[:, o0:o0 + cout_tile, :] = acc_r
            oi_ref[:, o0:o0 + cout_tile, :] = acc_i

    return kernel


def spectral_mix(xr, xi, wr, wi):
    """Complex 'bik,iok->bok' on real/imag planes.
    Last dim (Kp) must be a multiple of 128; Cout already padded to mult of 8."""
    B, Cin, Kp = xr.shape
    Cout_p = wr.shape[1]

    # per-lane VMEM bytes for one grid step, double-buffered (f32, 2 planes each)
    per_lane = 4 * 2 * 2 * (Cin * Cout_p + Cin + Cout_p)
    TK = _choose_lane_tile(Kp, per_lane)
    n_k = Kp // TK
    grid = (n_k, B)                             # batch innermost -> weight reuse

    x_spec = pl.BlockSpec((1, Cin, TK), lambda k, b: (b, 0, k))
    w_spec = pl.BlockSpec((Cin, Cout_p, TK), lambda k, b: (0, 0, k))
    o_spec = pl.BlockSpec((1, Cout_p, TK), lambda k, b: (b, 0, k))

    # accumulator chunk: keep each acc plane <= ~32 KiB (register resident)
    cout_tile = min(Cout_p, max(8, (8192 // TK) // 8 * 8))
    while Cout_p % cout_tile != 0:
        cout_tile -= 8

    kernel = _make_spectral_kernel(Cin, Cout_p, cout_tile)
    out_shape = (jax.ShapeDtypeStruct((B, Cout_p, Kp), jnp.float32),
                 jax.ShapeDtypeStruct((B, Cout_p, Kp), jnp.float32))
    return pl.pallas_call(
        kernel,
        out_shape=out_shape,
        grid=grid,
        in_specs=[x_spec, x_spec, w_spec, w_spec],
        out_specs=(o_spec, o_spec),
        compiler_params=pltpu.CompilerParams(
            dimension_semantics=("parallel", "arbitrary")),
    )(xr, xi, wr, wi)


# --------------------------- pointwise conv kernel ----------------------------

def _make_pointwise_kernel(cin, cout, use_mxu):
    if use_mxu:
        def kernel(x_ref, w_ref, b_ref, x1_ref, o_ref):
            # x_ref: (Bt, Cin, TN)  w_ref: (Cout, Cin) VMEM  b_ref: (Cout, 1) VMEM
            bt = x_ref.shape[0]
            w = w_ref[...]                        # hoisted out of batch loop
            bias = b_ref[...]
            for bi in range(bt):
                y = jnp.dot(w, x_ref[bi], preferred_element_type=jnp.float32)
                o_ref[bi] = y + bias + x1_ref[bi]
        return kernel

    def kernel(x_ref, w_ref, b_ref, x1_ref, o_ref):
        # small channels: W (Cout,Cin) and b (Cout,) live in SMEM -> scalar FMAs
        xs = [x_ref[:, c, :] for c in range(cin)]       # hoisted loads, (Bt, TN)
        for o in range(cout):
            acc = x1_ref[:, o, :] + b_ref[o]
            for c in range(cin):
                acc = acc + xs[c] * w_ref[o, c]
            o_ref[:, o, :] = acc
    return kernel


def pointwise_add(x_flat, W, b, x1_flat):
    """out[b,o,:] = sum_c W[o,c] * x[b,c,:] + b[o] + x1[b,o,:]
    Last dim must be a multiple of 128 (padded in the wrapper)."""
    B, Cin, HWp = x_flat.shape
    Cout = W.shape[0]
    use_mxu = min(Cin, Cout) >= 64

    # per-lane VMEM bytes (x + x1 + out streams, double-buffered, f32)
    per_lane = 4 * 2 * (Cin + 2 * Cout)
    TN = _choose_lane_tile(HWp, per_lane)
    grid = (B, HWp // TN)

    x_spec = pl.BlockSpec((1, Cin, TN), lambda i, j: (i, 0, j))
    y_spec = pl.BlockSpec((1, Cout, TN), lambda i, j: (i, 0, j))
    if use_mxu:
        w_spec = pl.BlockSpec((Cout, Cin), lambda i, j: (0, 0))
        b_spec = pl.BlockSpec((Cout, 1), lambda i, j: (0, 0))
        b_arg = b.reshape(Cout, 1)
    else:
        w_spec = pl.BlockSpec(memory_space=pltpu.MemorySpace.SMEM)
        b_spec = pl.BlockSpec(memory_space=pltpu.MemorySpace.SMEM)
        b_arg = b

    kernel = _make_pointwise_kernel(Cin, Cout, use_mxu)
    return pl.pallas_call(
        kernel,
        out_shape=jax.ShapeDtypeStruct((B, Cout, HWp), jnp.float32),
        grid=grid,
        in_specs=[x_spec, w_spec, b_spec, y_spec],
        out_specs=y_spec,
        compiler_params=pltpu.CompilerParams(
            dimension_semantics=("parallel", "parallel")),
    )(x_flat, W, b_arg, x1_flat)


# --------------------------- FNOBlock forward ---------------------------------

def fno_block_forward(x, R, W, b):
    """2D FNOBlock: SpectralConv2d_fast(x) + Conv2d_1x1(x)."""
    B, Cin, H, Wsp = x.shape
    m1 = R.shape[0] // 2
    m2 = R.shape[1]
    Cout = R.shape[2]
    Wf = Wsp // 2 + 1

    # weights: replicate spectal_convolution_from_luno_weights
    # R: (2*m1, m2, Cout, Cin) -> (Cin, Cout, 2*m1, m2)
    Rm = jnp.moveaxis(jnp.moveaxis(R, -1, 0), -1, 1)
    w1 = Rm[:, :, :m1, :]                      # (Cin, Cout, m1, m2)
    w2 = Rm[:, :, -m1:, :]                     # (Cin, Cout, m1, m2)

    K = 2 * m1 * m2
    Kp = max(128, _round_up(K, 128))           # lane-dense (multiple of 128)
    Cout_p = _round_up(Cout, 8)                # sublane-dense accumulators

    ws = jnp.concatenate([w1.reshape(Cin, Cout, m1 * m2),
                          w2.reshape(Cin, Cout, m1 * m2)], axis=-1)
    # zero-padded Cout rows / K columns contribute zero and are sliced off later
    ws = jnp.pad(ws, ((0, 0), (0, Cout_p - Cout), (0, Kp - K)))
    wsr = jnp.real(ws).astype(jnp.float32)
    wsi = jnp.imag(ws).astype(jnp.float32)

    # spectral branch (FFT in plain JAX — no Pallas FFT)
    x_ft = jnp.fft.rfft2(x)                    # (B, Cin, H, Wf) complex64
    x_top = x_ft[:, :, :m1, :m2].reshape(B, Cin, m1 * m2)
    x_bot = x_ft[:, :, H - m1:, :m2].reshape(B, Cin, m1 * m2)
    xs = jnp.concatenate([x_top, x_bot], axis=-1)        # (B, Cin, K)
    xs = jnp.pad(xs, ((0, 0), (0, 0), (0, Kp - K)))
    xsr = jnp.real(xs).astype(jnp.float32)
    xsi = jnp.imag(xs).astype(jnp.float32)

    or_, oi_ = spectral_mix(xsr, xsi, wsr, wsi)          # (B, Cout_p, Kp)
    o_c = (or_[:, :Cout, :K] + 1j * oi_[:, :Cout, :K]).astype(jnp.complex64)
    o_top = o_c[:, :, :m1 * m2].reshape(B, Cout, m1, m2)
    o_bot = o_c[:, :, m1 * m2:].reshape(B, Cout, m1, m2)

    out_ft = jnp.zeros((B, Cout, H, Wf), dtype=jnp.complex64)
    out_ft = out_ft.at[:, :, :m1, :m2].set(o_top)
    out_ft = out_ft.at[:, :, H - m1:, :m2].set(o_bot)
    x1 = jnp.fft.irfft2(out_ft, s=(H, Wsp)).astype(jnp.float32)   # (B,Cout,H,W)

    # pointwise 1x1 conv + bias + residual add, fused in one Pallas kernel
    HW = H * Wsp
    HWp = _round_up(HW, 128)
    x_flat = x.reshape(B, Cin, HW).astype(jnp.float32)
    x1_flat = x1.reshape(B, Cout, HW)
    if HWp != HW:
        x_flat = jnp.pad(x_flat, ((0, 0), (0, 0), (0, HWp - HW)))
        x1_flat = jnp.pad(x1_flat, ((0, 0), (0, 0), (0, HWp - HW)))

    out_flat = pointwise_add(x_flat, W.astype(jnp.float32),
                             b.astype(jnp.float32), x1_flat)
    return out_flat[:, :, :HW].reshape(B, Cout, H, Wsp)


# --------------------------- pure-JAX reference --------------------------------

def fno_block_reference(x, R, W, b):
    B, Cin, H, Wsp = x.shape
    m1 = R.shape[0] // 2
    m2 = R.shape[1]
    Cout = R.shape[2]
    Wf = Wsp // 2 + 1
    Rm = jnp.moveaxis(jnp.moveaxis(R, -1, 0), -1, 1)
    w1 = Rm[:, :, :m1, :]
    w2 = Rm[:, :, -m1:, :]
    x_ft = jnp.fft.rfft2(x)
    out_ft = jnp.zeros((B, Cout, H, Wf), dtype=jnp.complex64)
    out_ft = out_ft.at[:, :, :m1, :m2].set(
        jnp.einsum('bixy,ioxy->boxy', x_ft[:, :, :m1, :m2], w1))
    out_ft = out_ft.at[:, :, H - m1:, :m2].set(
        jnp.einsum('bixy,ioxy->boxy', x_ft[:, :, H - m1:, :m2], w2))
    x1 = jnp.fft.irfft2(out_ft, s=(H, Wsp))
    x2 = jnp.einsum('oi,bihw->bohw', W, x) + b[None, :, None, None]
    return (x1 + x2).astype(jnp.float32)


# --------------------------- main ----------------------------------------------

if __name__ == "__main__":
    key = jax.random.PRNGKey(0)
    B, Cin, Cout, H, Wsp = 2, 4, 4, 16, 16
    m1, m2 = 4, 4
    k1, k2, k3, k4, k5 = jax.random.split(key, 5)

    scale = 1.0 / (Cin * Cout)
    Rr = jax.random.uniform(k1, (2 * m1, m2, Cout, Cin), dtype=jnp.float32)
    Ri = jax.random.uniform(k2, (2 * m1, m2, Cout, Cin), dtype=jnp.float32)
    R = (scale * (Rr + 1j * Ri)).astype(jnp.complex64)     # luno weights
    W = jax.random.normal(k3, (Cout, Cin), dtype=jnp.float32) * 0.1
    b = jax.random.normal(k4, (Cout,), dtype=jnp.float32) * 0.1
    x = jax.random.normal(k5, (B, Cin, H, Wsp), dtype=jnp.float32)

    out = jax.jit(fno_block_forward)(x, R, W, b)
    jax.block_until_ready(out)

    ref = fno_block_reference(x, R, W, b)
    assert out.shape == (B, Cout, H, Wsp)
    assert jnp.allclose(out, ref, atol=1e-4, rtol=1e-4), "mismatch vs reference"
    print("KERNEL_OK")
</pallas_src>

<mosaic_0001>
module attributes {stable_mosaic.version = 11 : i64} {
  func.func @kernel(%arg0: i32, %arg1: i32, %arg2: memref<1x4x128xf32, #tpu.memory_space<vmem>>, %arg3: memref<1x4x128xf32, #tpu.memory_space<vmem>>, %arg4: memref<4x8x128xf32, #tpu.memory_space<vmem>>, %arg5: memref<4x8x128xf32, #tpu.memory_space<vmem>>, %arg6: memref<1x8x128xf32, #tpu.memory_space<vmem>>, %arg7: memref<1x8x128xf32, #tpu.memory_space<vmem>>) attributes {dimension_semantics = [#tpu.dimension_semantics<parallel>, #tpu.dimension_semantics<arbitrary>], iteration_bounds = array<i64: 1, 2>, scalar_prefetch = 0 : i64, scratch_operands = 0 : i64, tpu.core_type = #tpu.core_type<tc>, window_params = [{transform_indices = @transform_0, window_bounds = array<i64: 1, 4, 128>}, {transform_indices = @transform_1, window_bounds = array<i64: 1, 4, 128>}, {transform_indices = @transform_2, window_bounds = array<i64: 4, 8, 128>}, {transform_indices = @transform_3, window_bounds = array<i64: 4, 8, 128>}, {transform_indices = @transform_4, window_bounds = array<i64: 1, 8, 128>}, {transform_indices = @transform_5, window_bounds = array<i64: 1, 8, 128>}]} {
    %cst = arith.constant 0.000000e+00 : f32
    %0 = vector.broadcast %cst : f32 to vector<1x8x128xf32>
    %cst_0 = arith.constant 0.000000e+00 : f32
    %1 = vector.broadcast %cst_0 : f32 to vector<1x8x128xf32>
    %c0 = arith.constant 0 : index
    %c0_1 = arith.constant 0 : index
    %c0_2 = arith.constant 0 : index
    %2 = vector.load %arg2[%c0, %c0_1, %c0_2] : memref<1x4x128xf32, #tpu.memory_space<vmem>>, vector<1x1x128xf32>
    %c0_3 = arith.constant 0 : index
    %c0_4 = arith.constant 0 : index
    %c0_5 = arith.constant 0 : index
    %3 = vector.load %arg3[%c0_3, %c0_4, %c0_5] : memref<1x4x128xf32, #tpu.memory_space<vmem>>, vector<1x1x128xf32>
    %c0_6 = arith.constant 0 : index
    %c0_7 = arith.constant 0 : index
    %c0_8 = arith.constant 0 : index
    %4 = vector.load %arg4[%c0_6, %c0_7, %c0_8] : memref<4x8x128xf32, #tpu.memory_space<vmem>>, vector<1x8x128xf32>
    %c0_9 = arith.constant 0 : index
    %c0_10 = arith.constant 0 : index
    %c0_11 = arith.constant 0 : index
    %5 = vector.load %arg5[%c0_9, %c0_10, %c0_11] : memref<4x8x128xf32, #tpu.memory_space<vmem>>, vector<1x8x128xf32>
    %6 = vector.broadcast %2 : vector<1x1x128xf32> to vector<1x8x128xf32>
    %7 = arith.mulf %6, %4 : vector<1x8x128xf32>
    %8 = vector.broadcast %3 : vector<1x1x128xf32> to vector<1x8x128xf32>
    %9 = arith.mulf %8, %5 : vector<1x8x128xf32>
    %10 = arith.subf %7, %9 : vector<1x8x128xf32>
    %11 = arith.addf %0, %10 : vector<1x8x128xf32>
    %12 = vector.broadcast %2 : vector<1x1x128xf32> to vector<1x8x128xf32>
    %13 = arith.mulf %12, %5 : vector<1x8x128xf32>
    %14 = vector.broadcast %3 : vector<1x1x128xf32> to vector<1x8x128xf32>
    %15 = arith.mulf %14, %4 : vector<1x8x128xf32>
    %16 = arith.addf %13, %15 : vector<1x8x128xf32>
    %17 = arith.addf %1, %16 : vector<1x8x128xf32>
    %c0_12 = arith.constant 0 : index
    %c1 = arith.constant 1 : index
    %c0_13 = arith.constant 0 : index
    %18 = vector.load %arg2[%c0_12, %c1, %c0_13] : memref<1x4x128xf32, #tpu.memory_space<vmem>>, vector<1x1x128xf32>
    %c0_14 = arith.constant 0 : index
    %c1_15 = arith.constant 1 : index
    %c0_16 = arith.constant 0 : index
    %19 = vector.load %arg3[%c0_14, %c1_15, %c0_16] : memref<1x4x128xf32, #tpu.memory_space<vmem>>, vector<1x1x128xf32>
    %c1_17 = arith.constant 1 : index
    %c0_18 = arith.constant 0 : index
    %c0_19 = arith.constant 0 : index
    %20 = vector.load %arg4[%c1_17, %c0_18, %c0_19] : memref<4x8x128xf32, #tpu.memory_space<vmem>>, vector<1x8x128xf32>
    %c1_20 = arith.constant 1 : index
    %c0_21 = arith.constant 0 : index
    %c0_22 = arith.constant 0 : index
    %21 = vector.load %arg5[%c1_20, %c0_21, %c0_22] : memref<4x8x128xf32, #tpu.memory_space<vmem>>, vector<1x8x128xf32>
    %22 = vector.broadcast %18 : vector<1x1x128xf32> to vector<1x8x128xf32>
    %23 = arith.mulf %22, %20 : vector<1x8x128xf32>
    %24 = vector.broadcast %19 : vector<1x1x128xf32> to vector<1x8x128xf32>
    %25 = arith.mulf %24, %21 : vector<1x8x128xf32>
    %26 = arith.subf %23, %25 : vector<1x8x128xf32>
    %27 = arith.addf %11, %26 : vector<1x8x128xf32>
    %28 = vector.broadcast %18 : vector<1x1x128xf32> to vector<1x8x128xf32>
    %29 = arith.mulf %28, %21 : vector<1x8x128xf32>
    %30 = vector.broadcast %19 : vector<1x1x128xf32> to vector<1x8x128xf32>
    %31 = arith.mulf %30, %20 : vector<1x8x128xf32>
    %32 = arith.addf %29, %31 : vector<1x8x128xf32>
    %33 = arith.addf %17, %32 : vector<1x8x128xf32>
    %c0_23 = arith.constant 0 : index
    %c2 = arith.constant 2 : index
    %c0_24 = arith.constant 0 : index
    %34 = vector.load %arg2[%c0_23, %c2, %c0_24] : memref<1x4x128xf32, #tpu.memory_space<vmem>>, vector<1x1x128xf32>
    %c0_25 = arith.constant 0 : index
    %c2_26 = arith.constant 2 : index
    %c0_27 = arith.constant 0 : index
    %35 = vector.load %arg3[%c0_25, %c2_26, %c0_27] : memref<1x4x128xf32, #tpu.memory_space<vmem>>, vector<1x1x128xf32>
    %c2_28 = arith.constant 2 : index
    %c0_29 = arith.constant 0 : index
    %c0_30 = arith.constant 0 : index
    %36 = vector.load %arg4[%c2_28, %c0_29, %c0_30] : memref<4x8x128xf32, #tpu.memory_space<vmem>>, vector<1x8x128xf32>
    %c2_31 = arith.constant 2 : index
    %c0_32 = arith.constant 0 : index
    %c0_33 = arith.constant 0 : index
    %37 = vector.load %arg5[%c2_31, %c0_32, %c0_33] : memref<4x8x128xf32, #tpu.memory_space<vmem>>, vector<1x8x128xf32>
    %38 = vector.broadcast %34 : vector<1x1x128xf32> to vector<1x8x128xf32>
    %39 = arith.mulf %38, %36 : vector<1x8x128xf32>
    %40 = vector.broadcast %35 : vector<1x1x128xf32> to vector<1x8x128xf32>
    %41 = arith.mulf %40, %37 : vector<1x8x128xf32>
    %42 = arith.subf %39, %41 : vector<1x8x128xf32>
    %43 = arith.addf %27, %42 : vector<1x8x128xf32>
    %44 = vector.broadcast %34 : vector<1x1x128xf32> to vector<1x8x128xf32>
    %45 = arith.mulf %44, %37 : vector<1x8x128xf32>
    %46 = vector.broadcast %35 : vector<1x1x128xf32> to vector<1x8x128xf32>
    %47 = arith.mulf %46, %36 : vector<1x8x128xf32>
    %48 = arith.addf %45, %47 : vector<1x8x128xf32>
    %49 = arith.addf %33, %48 : vector<1x8x128xf32>
    %c0_34 = arith.constant 0 : index
    %c3 = arith.constant 3 : index
    %c0_35 = arith.constant 0 : index
    %50 = vector.load %arg2[%c0_34, %c3, %c0_35] : memref<1x4x128xf32, #tpu.memory_space<vmem>>, vector<1x1x128xf32>
    %c0_36 = arith.constant 0 : index
    %c3_37 = arith.constant 3 : index
    %c0_38 = arith.constant 0 : index
    %51 = vector.load %arg3[%c0_36, %c3_37, %c0_38] : memref<1x4x128xf32, #tpu.memory_space<vmem>>, vector<1x1x128xf32>
    %c3_39 = arith.constant 3 : index
    %c0_40 = arith.constant 0 : index
    %c0_41 = arith.constant 0 : index
    %52 = vector.load %arg4[%c3_39, %c0_40, %c0_41] : memref<4x8x128xf32, #tpu.memory_space<vmem>>, vector<1x8x128xf32>
    %c3_42 = arith.constant 3 : index
    %c0_43 = arith.constant 0 : index
    %c0_44 = arith.constant 0 : index
    %53 = vector.load %arg5[%c3_42, %c0_43, %c0_44] : memref<4x8x128xf32, #tpu.memory_space<vmem>>, vector<1x8x128xf32>
    %54 = vector.broadcast %50 : vector<1x1x128xf32> to vector<1x8x128xf32>
    %55 = arith.mulf %54, %52 : vector<1x8x128xf32>
    %56 = vector.broadcast %51 : vector<1x1x128xf32> to vector<1x8x128xf32>
    %57 = arith.mulf %56, %53 : vector<1x8x128xf32>
    %58 = arith.subf %55, %57 : vector<1x8x128xf32>
    %59 = arith.addf %43, %58 : vector<1x8x128xf32>
    %60 = vector.broadcast %50 : vector<1x1x128xf32> to vector<1x8x128xf32>
    %61 = arith.mulf %60, %53 : vector<1x8x128xf32>
    %62 = vector.broadcast %51 : vector<1x1x128xf32> to vector<1x8x128xf32>
    %63 = arith.mulf %62, %52 : vector<1x8x128xf32>
    %64 = arith.addf %61, %63 : vector<1x8x128xf32>
    %65 = arith.addf %49, %64 : vector<1x8x128xf32>
    %c0_45 = arith.constant 0 : index
    %c0_46 = arith.constant 0 : index
    %c0_47 = arith.constant 0 : index
    %66 = vector.load %arg6[%c0_45, %c0_46, %c0_47] : memref<1x8x128xf32, #tpu.memory_space<vmem>>, vector<1x8x128xf32>
    tpu.vector_store %arg6[%c0_45, %c0_46, %c0_47], %59 {strides = array<i32>} : memref<1x8x128xf32, #tpu.memory_space<vmem>>, vector<1x8x128xf32>,
    %c0_48 = arith.constant 0 : index
    %c0_49 = arith.constant 0 : index
    %c0_50 = arith.constant 0 : index
    %67 = vector.load %arg7[%c0_48, %c0_49, %c0_50] : memref<1x8x128xf32, #tpu.memory_space<vmem>>, vector<1x8x128xf32>
    tpu.vector_store %arg7[%c0_48, %c0_49, %c0_50], %65 {strides = array<i32>} : memref<1x8x128xf32, #tpu.memory_space<vmem>>, vector<1x8x128xf32>,
    return
  }
  func.func @transform_0(%arg0: i32, %arg1: i32) -> (i32, i32, i32) {
    %c0_i32 = arith.constant 0 : i32
    %c0_i32_0 = arith.constant 0 : i32
    return %arg1, %c0_i32, %arg0 : i32, i32, i32
  }
  func.func @transform_1(%arg0: i32, %arg1: i32) -> (i32, i32, i32) {
    %c0_i32 = arith.constant 0 : i32
    %c0_i32_0 = arith.constant 0 : i32
    return %arg1, %c0_i32, %arg0 : i32, i32, i32
  }
  func.func @transform_2(%arg0: i32, %arg1: i32) -> (i32, i32, i32) {
    %c0_i32 = arith.constant 0 : i32
    %c0_i32_0 = arith.constant 0 : i32
    %c0_i32_1 = arith.constant 0 : i32
    return %c0_i32, %c0_i32_0, %arg0 : i32, i32, i32
  }
  func.func @transform_3(%arg0: i32, %arg1: i32) -> (i32, i32, i32) {
    %c0_i32 = arith.constant 0 : i32
    %c0_i32_0 = arith.constant 0 : i32
    %c0_i32_1 = arith.constant 0 : i32
    return %c0_i32, %c0_i32_0, %arg0 : i32, i32, i32
  }
  func.func @transform_4(%arg0: i32, %arg1: i32) -> (i32, i32, i32) {
    %c0_i32 = arith.constant 0 : i32
    %c0_i32_0 = arith.constant 0 : i32
    return %arg1, %c0_i32, %arg0 : i32, i32, i32
  }
  func.func @transform_5(%arg0: i32, %arg1: i32) -> (i32, i32, i32) {
    %c0_i32 = arith.constant 0 : i32
    %c0_i32_0 = arith.constant 0 : i32
    return %arg1, %c0_i32, %arg0 : i32, i32, i32
  }
}

module attributes {stable_mosaic.version = 11 : i64} {
  func.func @kernel(%arg0: i32, %arg1: i32, %arg2: memref<1x4x256xf32, #tpu.memory_space<vmem>>, %arg3: memref<4x4xf32, #tpu.memory_space<smem>>, %arg4: memref<4xf32, #tpu.memory_space<smem>>, %arg5: memref<1x4x256xf32, #tpu.memory_space<vmem>>, %arg6: memref<1x4x256xf32, #tpu.memory_space<vmem>>) attributes {dimension_semantics = [#tpu.dimension_semantics<parallel>, #tpu.dimension_semantics<parallel>], iteration_bounds = array<i64: 2, 1>, scalar_prefetch = 0 : i64, scratch_operands = 0 : i64, tpu.core_type = #tpu.core_type<tc>, window_params = [{transform_indices = @transform_0, window_bounds = array<i64: 1, 4, 256>}, {transform_indices = @transform_1, window_bounds = array<i64: 4, 4>}, {transform_indices = @transform_2, window_bounds = array<i64: 4>}, {transform_indices = @transform_3, window_bounds = array<i64: 1, 4, 256>}, {transform_indices = @transform_4, window_bounds = array<i64: 1, 4, 256>}]} {
    %c0 = arith.constant 0 : index
    %c0_0 = arith.constant 0 : index
    %c0_1 = arith.constant 0 : index
    %0 = vector.load %arg2[%c0, %c0_0, %c0_1] : memref<1x4x256xf32, #tpu.memory_space<vmem>>, vector<1x1x256xf32>
    %1 = vector.shape_cast %0 : vector<1x1x256xf32> to vector<1x256xf32>
    %c0_2 = arith.constant 0 : index
    %c1 = arith.constant 1 : index
    %c0_3 = arith.constant 0 : index
    %2 = vector.load %arg2[%c0_2, %c1, %c0_3] : memref<1x4x256xf32, #tpu.memory_space<vmem>>, vector<1x1x256xf32>
    %3 = vector.shape_cast %2 : vector<1x1x256xf32> to vector<1x256xf32>
    %c0_4 = arith.constant 0 : index
    %c2 = arith.constant 2 : index
    %c0_5 = arith.constant 0 : index
    %4 = vector.load %arg2[%c0_4, %c2, %c0_5] : memref<1x4x256xf32, #tpu.memory_space<vmem>>, vector<1x1x256xf32>
    %5 = vector.shape_cast %4 : vector<1x1x256xf32> to vector<1x256xf32>
    %c0_6 = arith.constant 0 : index
    %c3 = arith.constant 3 : index
    %c0_7 = arith.constant 0 : index
    %6 = vector.load %arg2[%c0_6, %c3, %c0_7] : memref<1x4x256xf32, #tpu.memory_space<vmem>>, vector<1x1x256xf32>
    %7 = vector.shape_cast %6 : vector<1x1x256xf32> to vector<1x256xf32>
    %c0_8 = arith.constant 0 : index
    %c0_9 = arith.constant 0 : index
    %c0_10 = arith.constant 0 : index
    %8 = vector.load %arg5[%c0_8, %c0_9, %c0_10] : memref<1x4x256xf32, #tpu.memory_space<vmem>>, vector<1x1x256xf32>
    %9 = vector.shape_cast %8 : vector<1x1x256xf32> to vector<1x256xf32>
    %c0_11 = arith.constant 0 : index
    %10 = memref.load %arg4[%c0_11] : memref<4xf32, #tpu.memory_space<smem>>
    %11 = vector.broadcast %10 : f32 to vector<1x256xf32>
    %12 = arith.addf %9, %11 : vector<1x256xf32>
    %c0_12 = arith.constant 0 : index
    %c0_13 = arith.constant 0 : index
    %13 = memref.load %arg3[%c0_12, %c0_13] : memref<4x4xf32, #tpu.memory_space<smem>>
    %14 = vector.broadcast %13 : f32 to vector<1x256xf32>
    %15 = arith.mulf %1, %14 : vector<1x256xf32>
    %16 = arith.addf %12, %15 : vector<1x256xf32>
    %c0_14 = arith.constant 0 : index
    %c1_15 = arith.constant 1 : index
    %17 = memref.load %arg3[%c0_14, %c1_15] : memref<4x4xf32, #tpu.memory_space<smem>>
    %18 = vector.broadcast %17 : f32 to vector<1x256xf32>
    %19 = arith.mulf %3, %18 : vector<1x256xf32>
    %20 = arith.addf %16, %19 : vector<1x256xf32>
    %c0_16 = arith.constant 0 : index
    %c2_17 = arith.constant 2 : index
    %21 = memref.load %arg3[%c0_16, %c2_17] : memref<4x4xf32, #tpu.memory_space<smem>>
    %22 = vector.broadcast %21 : f32 to vector<1x256xf32>
    %23 = arith.mulf %5, %22 : vector<1x256xf32>
    %24 = arith.addf %20, %23 : vector<1x256xf32>
    %c0_18 = arith.constant 0 : index
    %c3_19 = arith.constant 3 : index
    %25 = memref.load %arg3[%c0_18, %c3_19] : memref<4x4xf32, #tpu.memory_space<smem>>
    %26 = vector.broadcast %25 : f32 to vector<1x256xf32>
    %27 = arith.mulf %7, %26 : vector<1x256xf32>
    %28 = arith.addf %24, %27 : vector<1x256xf32>
    %c0_20 = arith.constant 0 : index
    %c0_21 = arith.constant 0 : index
    %c0_22 = arith.constant 0 : index
    %29 = vector.load %arg6[%c0_20, %c0_21, %c0_22] : memref<1x4x256xf32, #tpu.memory_space<vmem>>, vector<1x1x256xf32>
    %30 = vector.shape_cast %29 : vector<1x1x256xf32> to vector<1x256xf32>
    %31 = vector.shape_cast %28 : vector<1x256xf32> to vector<1x1x256xf32>
    tpu.vector_store %arg6[%c0_20, %c0_21, %c0_22], %31 {strides = array<i32>} : memref<1x4x256xf32, #tpu.memory_space<vmem>>, vector<1x1x256xf32>,
    %c0_23 = arith.constant 0 : index
    %c1_24 = arith.constant 1 : index
    %c0_25 = arith.constant 0 : index
    %32 = vector.load %arg5[%c0_23, %c1_24, %c0_25] : memref<1x4x256xf32, #tpu.memory_space<vmem>>, vector<1x1x256xf32>
    %33 = vector.shape_cast %32 : vector<1x1x256xf32> to vector<1x256xf32>
    %c1_26 = arith.constant 1 : index
    %34 = memref.load %arg4[%c1_26] : memref<4xf32, #tpu.memory_space<smem>>
    %35 = vector.broadcast %34 : f32 to vector<1x256xf32>
    %36 = arith.addf %33, %35 : vector<1x256xf32>
    %c1_27 = arith.constant 1 : index
    %c0_28 = arith.constant 0 : index
    %37 = memref.load %arg3[%c1_27, %c0_28] : memref<4x4xf32, #tpu.memory_space<smem>>
    %38 = vector.broadcast %37 : f32 to vector<1x256xf32>
    %39 = arith.mulf %1, %38 : vector<1x256xf32>
    %40 = arith.addf %36, %39 : vector<1x256xf32>
    %c1_29 = arith.constant 1 : index
    %c1_30 = arith.constant 1 : index
    %41 = memref.load %arg3[%c1_29, %c1_30] : memref<4x4xf32, #tpu.memory_space<smem>>
    %42 = vector.broadcast %41 : f32 to vector<1x256xf32>
    %43 = arith.mulf %3, %42 : vector<1x256xf32>
    %44 = arith.addf %40, %43 : vector<1x256xf32>
    %c1_31 = arith.constant 1 : index
    %c2_32 = arith.constant 2 : index
    %45 = memref.load %arg3[%c1_31, %c2_32] : memref<4x4xf32, #tpu.memory_space<smem>>
    %46 = vector.broadcast %45 : f32 to vector<1x256xf32>
    %47 = arith.mulf %5, %46 : vector<1x256xf32>
    %48 = arith.addf %44, %47 : vector<1x256xf32>
    %c1_33 = arith.constant 1 : index
    %c3_34 = arith.constant 3 : index
    %49 = memref.load %arg3[%c1_33, %c3_34] : memref<4x4xf32, #tpu.memory_space<smem>>
    %50 = vector.broadcast %49 : f32 to vector<1x256xf32>
    %51 = arith.mulf %7, %50 : vector<1x256xf32>
    %52 = arith.addf %48, %51 : vector<1x256xf32>
    %c0_35 = arith.constant 0 : index
    %c1_36 = arith.constant 1 : index
    %c0_37 = arith.constant 0 : index
    %53 = vector.load %arg6[%c0_35, %c1_36, %c0_37] : memref<1x4x256xf32, #tpu.memory_space<vmem>>, vector<1x1x256xf32>
    %54 = vector.shape_cast %53 : vector<1x1x256xf32> to vector<1x256xf32>
    %55 = vector.shape_cast %52 : vector<1x256xf32> to vector<1x1x256xf32>
    tpu.vector_store %arg6[%c0_35, %c1_36, %c0_37], %55 {strides = array<i32>} : memref<1x4x256xf32, #tpu.memory_space<vmem>>, vector<1x1x256xf32>,
    %c0_38 = arith.constant 0 : index
    %c2_39 = arith.constant 2 : index
    %c0_40 = arith.constant 0 : index
    %56 = vector.load %arg5[%c0_38, %c2_39, %c0_40] : memref<1x4x256xf32, #tpu.memory_space<vmem>>, vector<1x1x256xf32>
    %57 = vector.shape_cast %56 : vector<1x1x256xf32> to vector<1x256xf32>
    %c2_41 = arith.constant 2 : index
    %58 = memref.load %arg4[%c2_41] : memref<4xf32, #tpu.memory_space<smem>>
    %59 = vector.broadcast %58 : f32 to vector<1x256xf32>
    %60 = arith.addf %57, %59 : vector<1x256xf32>
    %c2_42 = arith.constant 2 : index
    %c0_43 = arith.constant 0 : index
    %61 = memref.load %arg3[%c2_42, %c0_43] : memref<4x4xf32, #tpu.memory_space<smem>>
    %62 = vector.broadcast %61 : f32 to vector<1x256xf32>
    %63 = arith.mulf %1, %62 : vector<1x256xf32>
    %64 = arith.addf %60, %63 : vector<1x256xf32>
    %c2_44 = arith.constant 2 : index
    %c1_45 = arith.constant 1 : index
    %65 = memref.load %arg3[%c2_44, %c1_45] : memref<4x4xf32, #tpu.memory_space<smem>>
    %66 = vector.broadcast %65 : f32 to vector<1x256xf32>
    %67 = arith.mulf %3, %66 : vector<1x256xf32>
    %68 = arith.addf %64, %67 : vector<1x256xf32>
    %c2_46 = arith.constant 2 : index
    %c2_47 = arith.constant 2 : index
    %69 = memref.load %arg3[%c2_46, %c2_47] : memref<4x4xf32, #tpu.memory_space<smem>>
    %70 = vector.broadcast %69 : f32 to vector<1x256xf32>
    %71 = arith.mulf %5, %70 : vector<1x256xf32>
    %72 = arith.addf %68, %71 : vector<1x256xf32>
    %c2_48 = arith.constant 2 : index
    %c3_49 = arith.constant 3 : index
    %73 = memref.load %arg3[%c2_48, %c3_49] : memref<4x4xf32, #tpu.memory_space<smem>>
    %74 = vector.broadcast %73 : f32 to vector<1x256xf32>
    %75 = arith.mulf %7, %74 : vector<1x256xf32>
    %76 = arith.addf %72, %75 : vector<1x256xf32>
    %c0_50 = arith.constant 0 : index
    %c2_51 = arith.constant 2 : index
    %c0_52 = arith.constant 0 : index
    %77 = vector.load %arg6[%c0_50, %c2_51, %c0_52] : memref<1x4x256xf32, #tpu.memory_space<vmem>>, vector<1x1x256xf32>
    %78 = vector.shape_cast %77 : vector<1x1x256xf32> to vector<1x256xf32>
    %79 = vector.shape_cast %76 : vector<1x256xf32> to vector<1x1x256xf32>
    tpu.vector_store %arg6[%c0_50, %c2_51, %c0_52], %79 {strides = array<i32>} : memref<1x4x256xf32, #tpu.memory_space<vmem>>, vector<1x1x256xf32>,
    %c0_53 = arith.constant 0 : index
    %c3_54 = arith.constant 3 : index
    %c0_55 = arith.constant 0 : index
    %80 = vector.load %arg5[%c0_53, %c3_54, %c0_55] : memref<1x4x256xf32, #tpu.memory_space<vmem>>, vector<1x1x256xf32>
    %81 = vector.shape_cast %80 : vector<1x1x256xf32> to vector<1x256xf32>
    %c3_56 = arith.constant 3 : index
    %82 = memref.load %arg4[%c3_56] : memref<4xf32, #tpu.memory_space<smem>>
    %83 = vector.broadcast %82 : f32 to vector<1x256xf32>
    %84 = arith.addf %81, %83 : vector<1x256xf32>
    %c3_57 = arith.constant 3 : index
    %c0_58 = arith.constant 0 : index
    %85 = memref.load %arg3[%c3_57, %c0_58] : memref<4x4xf32, #tpu.memory_space<smem>>
    %86 = vector.broadcast %85 : f32 to vector<1x256xf32>
    %87 = arith.mulf %1, %86 : vector<1x256xf32>
    %88 = arith.addf %84, %87 : vector<1x256xf32>
    %c3_59 = arith.constant 3 : index
    %c1_60 = arith.constant 1 : index
    %89 = memref.load %arg3[%c3_59, %c1_60] : memref<4x4xf32, #tpu.memory_space<smem>>
    %90 = vector.broadcast %89 : f32 to vector<1x256xf32>
    %91 = arith.mulf %3, %90 : vector<1x256xf32>
    %92 = arith.addf %88, %91 : vector<1x256xf32>
    %c3_61 = arith.constant 3 : index
    %c2_62 = arith.constant 2 : index
    %93 = memref.load %arg3[%c3_61, %c2_62] : memref<4x4xf32, #tpu.memory_space<smem>>
    %94 = vector.broadcast %93 : f32 to vector<1x256xf32>
    %95 = arith.mulf %5, %94 : vector<1x256xf32>
    %96 = arith.addf %92, %95 : vector<1x256xf32>
    %c3_63 = arith.constant 3 : index
    %c3_64 = arith.constant 3 : index
    %97 = memref.load %arg3[%c3_63, %c3_64] : memref<4x4xf32, #tpu.memory_space<smem>>
    %98 = vector.broadcast %97 : f32 to vector<1x256xf32>
    %99 = arith.mulf %7, %98 : vector<1x256xf32>
    %100 = arith.addf %96, %99 : vector<1x256xf32>
    %c0_65 = arith.constant 0 : index
    %c3_66 = arith.constant 3 : index
    %c0_67 = arith.constant 0 : index
    %101 = vector.load %arg6[%c0_65, %c3_66, %c0_67] : memref<1x4x256xf32, #tpu.memory_space<vmem>>, vector<1x1x256xf32>
    %102 = vector.shape_cast %101 : vector<1x1x256xf32> to vector<1x256xf32>
    %103 = vector.shape_cast %100 : vector<1x256xf32> to vector<1x1x256xf32>
    tpu.vector_store %arg6[%c0_65, %c3_66, %c0_67], %103 {strides = array<i32>} : memref<1x4x256xf32, #tpu.memory_space<vmem>>, vector<1x1x256xf32>,
    return
  }
  func.func @transform_0(%arg0: i32, %arg1: i32) -> (i32, i32, i32) {
    %c0_i32 = arith.constant 0 : i32
    %c0_i32_0 = arith.constant 0 : i32
    return %arg0, %c0_i32, %arg1 : i32, i32, i32
  }
  func.func @transform_1(%arg0: i32, %arg1: i32) -> (i32, i32) {
    %c0_i32 = arith.constant 0 : i32
    %c0_i32_0 = arith.constant 0 : i32
    %c0_i32_1 = arith.constant 0 : i32
    return %c0_i32, %c0_i32_0 : i32, i32
  }
  func.func @transform_2(%arg0: i32, %arg1: i32) -> i32 {
    %c0_i32 = arith.constant 0 : i32
    %c0_i32_0 = arith.constant 0 : i32
    return %c0_i32 : i32
  }
  func.func @transform_3(%arg0: i32, %arg1: i32) -> (i32, i32, i32) {
    %c0_i32 = arith.constant 0 : i32
    %c0_i32_0 = arith.constant 0 : i32
    return %arg0, %c0_i32, %arg1 : i32, i32, i32
  }
  func.func @transform_4(%arg0: i32, %arg1: i32) -> (i32, i32, i32) {
    %c0_i32 = arith.constant 0 : i32
    %c0_i32_0 = arith.constant 0 : i32
    return %arg0, %c0_i32, %arg1 : i32, i32, i32
  }
}

</mosaic_0001>

<llo_original>
// kernel: custom-call
$region0: #{custom-call}
  %s0 = inlined_call_operand.hbm [shape: c64[8,4,4,4], index: 0, kind: input, shape index: {}]
  %s1 = inlined_call_operand.vmem [shape: f32[8,4,4,4], index: 1, kind: output, shape index: {}]
  $region1: #{custom-call} parent=0
    #allocation0 [shape = 's32[1]{0}', space=sflag, size = 0x4, scoped, tag = 'scoped memory for custom-call']
    %2 = vsyncpa [#allocation0], 0
    %s3 = sshll.u32 %s1, 4
    %s4 = int_to_ptr.vmem [resolvable:$true] %s3
    %6 = dma.hbm_to_vmem [thread:$0]  %s0, 1024, %s4, [#allocation0]
    %7 = dma.done [#allocation0], 1024
    %8 = vsyncpa [#allocation0], 1

// kernel: custom-call.1
$region0: #{custom-call.1}
  %s0 = inlined_call_operand.hbm [shape: c64[8,4,4,4], index: 0, kind: input, shape index: {}]
  %s1 = inlined_call_operand.vmem [shape: f32[8,4,4,4], index: 1, kind: output, shape index: {}]
  %s2 = scalar_lea.hbm %s0, 1024
  $region1: #{custom-call.1} parent=0
    #allocation0 [shape = 's32[1]{0}', space=sflag, size = 0x4, scoped, tag = 'scoped memory for custom-call.1']
    %3 = vsyncpa [#allocation0], 0
    %s4 = sshll.u32 %s1, 4
    %s5 = int_to_ptr.vmem [resolvable:$true] %s4
    %7 = dma.hbm_to_vmem [thread:$0]  %s2, 1024, %s5, [#allocation0]
    %8 = dma.done [#allocation0], 1024
    %9 = vsyncpa [#allocation0], 1

// kernel: fno_block_forward.2
$region0: #{fno_block_forward.2}
  #allocation0 [shape = 'u32[]', space=smem, size = 0x4, offset = 0x4, fixed_abs, tag = 'smem constant byte address 0x4 - core index']
  #allocation1 [shape = 'u32[144,128]{1,0:T(1,128)}', space=vmem, size = 0x12000, scoped, tag = 'internal scratch']
  %s0 = inlined_call_operand.vmem [shape: f32[2,4,128], index: 0, kind: input, shape index: {}]
  %s1 = inlined_call_operand.vmem [shape: f32[2,4,128], index: 1, kind: input, shape index: {}]
  %s2 = inlined_call_operand.vmem [shape: f32[4,8,128], index: 2, kind: input, shape index: {}]
  %s3 = inlined_call_operand.vmem [shape: f32[4,8,128], index: 3, kind: input, shape index: {}]
  %s4 = inlined_call_operand.vmem [shape: f32[2,8,128], index: 4, kind: output, shape index: {0}]
  %s5 = inlined_call_operand.vmem [shape: f32[2,8,128], index: 5, kind: output, shape index: {1}]
  %6 = xla_tuple %s4, %s5
  %s7 = sld [smem:[#allocation0]]
  $region57: #{fno_block_forward.2} parent=0
    _
  %s9 = ssub.s32 1, %s7
  %s10 = scalar_select 0, %s9, %s7
  loop: start=0, step=1, limit=4
  $region2: #{fno_block_forward.2} parent=0 // loop_pre_header
    _
  $region3: #{fno_block_forward.2} parent=0 // loop_header
    %s12 = sphi 0, %s16
    %p13 = scmp.ge.s32.totalorder %s12, 4
    %s19 = sphi 0, %s31
    %s20 = sphi 0, %s27
    %s21 = sphi 0, %s19
    %s22 = sphi 0, %s20
    %s23 = sphi 0, %s21
    %s24 = sphi 0, %s22
    %s36 = sphi 0, %s38
    %s39 = sphi 0, %s36
    %s40 = sphi 0, %s39
    %s56 = sphi 0, %s40
    %s64 = sphi 0, %s66
    %s67 = sphi 0, %s64
    %s68 = sphi 0, %s67
    %s84 = sphi 0, %s68
    %s90 = sphi 0, %s92
    %s93 = sphi 0, %s90
    %s94 = sphi 0, %s93
    %s110 = sphi 0, %s94
    %s116 = sphi 0, %s118
    %s119 = sphi 0, %s116
    %s120 = sphi 0, %s119
    %s136 = sphi 0, %s120
    %s144 = sphi 0, %s146
    %s147 = sphi 0, %s144
    %s148 = sphi 0, %s147
    %s164 = sphi 0, %s148
    %s172 = sphi 0, %s174
    %s175 = sphi 0, %s172
    %s176 = sphi 0, %s175
    %s192 = sphi 0, %s176
  $region4: #{fno_block_forward.2} parent=0 // loop_header_branch
    %15 = sbr.rel (%p13) target = $region8
  $region5: #{fno_block_forward.2} parent=0 // loop_body
    %s17 = ssub.s32 %s12, 1
    %s18 = ssub.s32 %s12, 2
    %s25 = sadd.s32 1, %s20
    %p26 = scmp.ge.s32.totalorder %s25, 2
    %s27 = scalar_select %p26, 0, %s25
    %s28 = sadd.s32 1, %s19
    %s29 = scalar_select %p26, %s28, %s19
    %p30 = scmp.ge.s32.totalorder %s29, 1
    %s31 = scalar_select %p30, 0, %s29
    %s32 = ssub.s32 %s20, %s27
    %s33 = ssub.s32 %s19, %s31
    %s34 = sor.u32 %s32, %s33
    %p35 = scmp.eq.s32.totalorder %s34, 0
    %s37 = sadd.s32 %s36, 1
    %s38 = scalar_select %p35, %s36, %s37
    %p41 = pneg %p35
    %p42 = scmp.eq.s32.totalorder %s12, 1
    %p43 = por %p41, %p42
    %p44 = scmp.ne.s32.totalorder %s36, %s39
    %p45 = scmp.eq.s32.totalorder %s12, 0
    %p46 = por %p44, %p45
    %p47 = scmp.ne.s32.totalorder %s36, %s39
    %p48 = scmp.eq.s32.totalorder %s17, 1
    %p49 = por %p47, %p48
    %p50 = scmp.ne.s32.totalorder %s39, %s40
    %p51 = scmp.eq.s32.totalorder %s17, 0
    %p52 = por %p50, %p51
    %p53 = scmp.ne.s32.totalorder %s39, %s40
    %p54 = scmp.eq.s32.totalorder %s18, 1
    %p55 = por %p53, %p54
    %p57 = scmp.ne.s32.totalorder %s40, %s56
    %p58 = scmp.eq.s32.totalorder %s18, 0
    %p59 = por %p57, %p58
    %s60 = ssub.s32 %s20, %s27
    %s61 = ssub.s32 %s19, %s31
    %s62 = sor.u32 %s60, %s61
    %p63 = scmp.eq.s32.totalorder %s62, 0
    %s65 = sadd.s32 %s64, 1
    %s66 = scalar_select %p63, %s64, %s65
    %p69 = pneg %p63
    %p70 = scmp.eq.s32.totalorder %s12, 1
    %p71 = por %p69, %p70
    %p72 = scmp.ne.s32.totalorder %s64, %s67
    %p73 = scmp.eq.s32.totalorder %s12, 0
    %p74 = por %p72, %p73
    %p75 = scmp.ne.s32.totalorder %s64, %s67
    %p76 = scmp.eq.s32.totalorder %s17, 1
    %p77 = por %p75, %p76
    %p78 = scmp.ne.s32.totalorder %s67, %s68
    %p79 = scmp.eq.s32.totalorder %s17, 0
    %p80 = por %p78, %p79
    %p81 = scmp.ne.s32.totalorder %s67, %s68
    %p82 = scmp.eq.s32.totalorder %s18, 1
    %p83 = por %p81, %p82
    %p85 = scmp.ne.s32.totalorder %s68, %s84
    %p86 = scmp.eq.s32.totalorder %s18, 0
    %p87 = por %p85, %p86
    %s88 = ssub.s32 %s19, %s31
    %p89 = scmp.eq.s32.totalorder %s88, 0
    %s91 = sadd.s32 %s90, 1
    %s92 = scalar_select %p89, %s90, %s91
    %p95 = pneg %p89
    %p96 = scmp.eq.s32.totalorder %s12, 1
    %p97 = por %p95, %p96
    %p98 = scmp.ne.s32.totalorder %s90, %s93
    %p99 = scmp.eq.s32.totalorder %s12, 0
    %p100 = por %p98, %p99
    %p101 = scmp.ne.s32.totalorder %s90, %s93
    %p102 = scmp.eq.s32.totalorder %s17, 1
    %p103 = por %p101, %p102
    %p104 = scmp.ne.s32.totalorder %s93, %s94
    %p105 = scmp.eq.s32.totalorder %s17, 0
    %p106 = por %p104, %p105
    %p107 = scmp.ne.s32.totalorder %s93, %s94
    %p108 = scmp.eq.s32.totalorder %s18, 1
    %p109 = por %p107, %p108
    %p111 = scmp.ne.s32.totalorder %s94, %s110
    %p112 = scmp.eq.s32.totalorder %s18, 0
    %p113 = por %p111, %p112
    %s114 = ssub.s32 %s19, %s31
    %p115 = scmp.eq.s32.totalorder %s114, 0
    %s117 = sadd.s32 %s116, 1
    %s118 = scalar_select %p115, %s116, %s117
    %p121 = pneg %p115
    %p122 = scmp.eq.s32.totalorder %s12, 1
    %p123 = por %p121, %p122
    %p124 = scmp.ne.s32.totalorder %s116, %s119
    %p125 = scmp.eq.s32.totalorder %s12, 0
    %p126 = por %p124, %p125
    %p127 = scmp.ne.s32.totalorder %s116, %s119
    %p128 = scmp.eq.s32.totalorder %s17, 1
    %p129 = por %p127, %p128
    %p130 = scmp.ne.s32.totalorder %s119, %s120
    %p131 = scmp.eq.s32.totalorder %s17, 0
    %p132 = por %p130, %p131
    %p133 = scmp.ne.s32.totalorder %s119, %s120
    %p134 = scmp.eq.s32.totalorder %s18, 1
    %p135 = por %p133, %p134
    %p137 = scmp.ne.s32.totalorder %s120, %s136
    %p138 = scmp.eq.s32.totalorder %s18, 0
    %p139 = por %p137, %p138
    %s140 = ssub.s32 %s20, %s27
    %s141 = ssub.s32 %s19, %s31
    %s142 = sor.u32 %s140, %s141
    %p143 = scmp.eq.s32.totalorder %s142, 0
    %s145 = sadd.s32 %s144, 1
    %s146 = scalar_select %p143, %s144, %s145
    %p149 = pneg %p143
    %p150 = scmp.eq.s32.totalorder %s12, 1
    %p151 = por %p149, %p150
    %p152 = scmp.ne.s32.totalorder %s144, %s147
    %p153 = scmp.eq.s32.totalorder %s12, 0
    %p154 = por %p152, %p153
    %p155 = scmp.ne.s32.totalorder %s144, %s147
    %p156 = scmp.eq.s32.totalorder %s17, 1
    %p157 = por %p155, %p156
    %p158 = scmp.ne.s32.totalorder %s147, %s148
    %p159 = scmp.eq.s32.totalorder %s17, 0
    %p160 = por %p158, %p159
    %p161 = scmp.ne.s32.totalorder %s147, %s148
    %p162 = scmp.eq.s32.totalorder %s18, 1
    %p163 = por %p161, %p162
    %p165 = scmp.ne.s32.totalorder %s148, %s164
    %p166 = scmp.eq.s32.totalorder %s18, 0
    %p167 = por %p165, %p166
    %s168 = ssub.s32 %s20, %s27
    %s169 = ssub.s32 %s19, %s31
    %s170 = sor.u32 %s168, %s169
    %p171 = scmp.eq.s32.totalorder %s170, 0
    %s173 = sadd.s32 %s172, 1
    %s174 = scalar_select %p171, %s172, %s173
    %p177 = pneg %p171
    %p178 = scmp.eq.s32.totalorder %s12, 1
    %p179 = por %p177, %p178
    %p180 = scmp.ne.s32.totalorder %s172, %s175
    %p181 = scmp.eq.s32.totalorder %s12, 0
    %p182 = por %p180, %p181
    %p183 = scmp.ne.s32.totalorder %s172, %s175
    %p184 = scmp.eq.s32.totalorder %s17, 1
    %p185 = por %p183, %p184
    %p186 = scmp.ne.s32.totalorder %s175, %s176
    %p187 = scmp.eq.s32.totalorder %s17, 0
    %p188 = por %p186, %p187
    %p189 = scmp.ne.s32.totalorder %s175, %s176
    %p190 = scmp.eq.s32.totalorder %s18, 1
    %p191 = por %p189, %p190
    %p193 = scmp.ne.s32.totalorder %s176, %s192
    %p194 = scmp.eq.s32.totalorder %s18, 0
    %p195 = por %p193, %p194
    %p196 = scmp.le.s32.totalorder 1, %s12
    %p197 = scmp.lt.s32.totalorder %s12, 3
    %p198 = pnand %p196, %p197
    %p199 = pneg %p198
    // Predicated region
    $region9: #{fno_block_forward.2} parent=5 // pred_check
      _
    $region10: #{fno_block_forward.2} parent=5 // pred_check_branch
      %201 = sbr.rel (%p198) target = $region12
    $region11: #{fno_block_forward.2} parent=5 // pred_region
      %s202 = ssub.s32 %s12, 1
      // Predicated region
      $region13: #{fno_block_forward.2} parent=11 // pred_check
        %p203 = pneg %p106
      $region14: #{fno_block_forward.2} parent=11 // pred_check_branch
        %205 = sbr.rel (%p203) target = $region16
      $region15: #{fno_block_forward.2} parent=11 // pred_region
        %p206 = scmp.lt.s32.totalorder %s21, 0
        %s207 = scalar_select %p206, %s21, 0
        %s208 = smul.addr %s207, 8
        %s209 = scalar_lea.vmem %s2, %s208
      $region16: #{fno_block_forward.2} parent=11 // pred_fallthru
        _
      // Predicated region
      $region17: #{fno_block_forward.2} parent=11 // pred_check
        %p210 = pneg %p132
      $region18: #{fno_block_forward.2} parent=11 // pred_check_branch
        %212 = sbr.rel (%p210) target = $region20
      $region19: #{fno_block_forward.2} parent=11 // pred_region
        %p213 = scmp.lt.s32.totalorder %s21, 0
        %s214 = scalar_select %p213, %s21, 0
        %s215 = smul.addr %s214, 8
        %s216 = scalar_lea.vmem %s3, %s215
      $region20: #{fno_block_forward.2} parent=11 // pred_fallthru
        _
    $region12: #{fno_block_forward.2} parent=5 // pred_fallthru
      _
    %p217 = scmp.lt.s32.totalorder %s12, 2
    // Predicated region
    $region21: #{fno_block_forward.2} parent=5 // pred_check
      %p218 = pneg %p217
    $region22: #{fno_block_forward.2} parent=5 // pred_check_branch
      %220 = sbr.rel (%p218) target = $region24
    $region23: #{fno_block_forward.2} parent=5 // pred_region
      // Predicated region
      $region25: #{fno_block_forward.2} parent=23 // pred_check
        %p221 = pneg %p46
      $region26: #{fno_block_forward.2} parent=23 // pred_check_branch
        %223 = sbr.rel (%p221) target = $region28
      $region27: #{fno_block_forward.2} parent=23 // pred_region
        %p224 = scmp.lt.s32.totalorder %s20, 1
        %s225 = scalar_select %p224, %s20, 1
        %p226 = scmp.lt.s32.totalorder %s19, 0
        %s227 = scalar_select %p226, %s19, 0
        %s228 = sadd.s32 %s227, %s225
        %s229 = smul.addr %s228, 4
        %s230 = scalar_lea.vmem %s0, %s229
      $region28: #{fno_block_forward.2} parent=23 // pred_fallthru
        _
      // Predicated region
      $region29: #{fno_block_forward.2} parent=23 // pred_check
        %p231 = pneg %p74
      $region30: #{fno_block_forward.2} parent=23 // pred_check_branch
        %233 = sbr.rel (%p231) target = $region32
      $region31: #{fno_block_forward.2} parent=23 // pred_region
        %p234 = scmp.lt.s32.totalorder %s20, 1
        %s235 = scalar_select %p234, %s20, 1
        %p236 = scmp.lt.s32.totalorder %s19, 0
        %s237 = scalar_select %p236, %s19, 0
        %s238 = sadd.s32 %s237, %s235
        %s239 = smul.addr %s238, 4
        %s240 = scalar_lea.vmem %s1, %s239
      $region32: #{fno_block_forward.2} parent=23 // pred_fallthru
        _
    $region24: #{fno_block_forward.2} parent=5 // pred_fallthru
      _
    %p241 = scmp.le.s32.totalorder 1, %s12
    %p242 = scmp.lt.s32.totalorder %s12, 3
    %p243 = pnand %p241, %p242
    %p244 = pneg %p243
    // Predicated region
    $region33: #{fno_block_forward.2} parent=5 // pred_check
      _
    $region34: #{fno_block_forward.2} parent=5 // pred_check_branch
      %246 = sbr.rel (%p243) target = $region36
    $region35: #{fno_block_forward.2} parent=5 // pred_region
      %s247 = ssub.s32 %s12, 1
      %p248 = scmp.lt.s32.totalorder %s22, 1
      %s249 = scalar_select %p248, %s22, 1
      %p250 = scmp.lt.s32.totalorder %s21, 0
      %s251 = scalar_select %p250, %s21, 0
      %s252 = sadd.s32 %s251, %s249
      %s253 = smul.addr %s252, 4
      %s254 = scalar_lea.vmem %s0, %s253
      %p255 = pneg %p52
      %p256 = pneg %p49
      %p257 = scmp.lt.s32.totalorder %s22, 1
      %s258 = scalar_select %p257, %s22, 1
      %p259 = scmp.lt.s32.totalorder %s21, 0
      %s260 = scalar_select %p259, %s21, 0
      %s261 = sadd.s32 %s260, %s258
      %s262 = smul.addr %s261, 4
      %s263 = scalar_lea.vmem %s1, %s262
      %p264 = pneg %p80
      %p265 = pneg %p77
      %p266 = scmp.lt.s32.totalorder %s21, 0
      %s267 = scalar_select %p266, %s21, 0
      %s268 = smul.addr %s267, 8
      %s269 = scalar_lea.vmem %s2, %s268
      %p270 = pneg %p106
      %p271 = pneg %p103
      %p272 = scmp.lt.s32.totalorder %s21, 0
      %s273 = scalar_select %p272, %s21, 0
      %s274 = smul.addr %s273, 8
      %s275 = scalar_lea.vmem %s3, %s274
      %p276 = pneg %p132
      %p277 = pneg %p129
      %p278 = pneg %p160
      %p279 = pneg %p157
      %p280 = scmp.lt.s32.totalorder %s22, 1
      %s281 = scalar_select %p280, %s22, 1
      %p282 = scmp.lt.s32.totalorder %s21, 0
      %s283 = scalar_select %p282, %s21, 0
      %s284 = sadd.s32 %s283, %s281
      %s285 = smul.addr %s284, 8
      %s286 = scalar_lea.vmem %s4, %s285
      %p287 = pneg %p188
      %p288 = pneg %p185
      %p289 = scmp.lt.s32.totalorder %s22, 1
      %s290 = scalar_select %p289, %s22, 1
      %p291 = scmp.lt.s32.totalorder %s21, 0
      %s292 = scalar_select %p291, %s21, 0
      %s293 = sadd.s32 %s292, %s290
      %s294 = smul.addr %s293, 8
      %s295 = scalar_lea.vmem %s5, %s294
      %p296 = scmp.lt.s32.totalorder %s22, 1
      %s297 = scalar_select %p296, %s22, 1
      %p298 = scmp.lt.s32.totalorder %s21, 0
      %s299 = scalar_select %p298, %s21, 0
      %s300 = sadd.s32 %s299, %s297
      %s301 = smul.addr %s300, 4
      %s302 = scalar_lea.vmem %s0, %s301
      %p303 = scmp.lt.s32.totalorder %s22, 1
      %s304 = scalar_select %p303, %s22, 1
      %p305 = scmp.lt.s32.totalorder %s21, 0
      %s306 = scalar_select %p305, %s21, 0
      %s307 = sadd.s32 %s306, %s304
      %s308 = smul.addr %s307, 4
      %s309 = scalar_lea.vmem %s1, %s308
      %p310 = scmp.lt.s32.totalorder %s21, 0
      %s311 = scalar_select %p310, %s21, 0
      %s312 = smul.addr %s311, 8
      %s313 = scalar_lea.vmem %s2, %s312
      %p314 = scmp.lt.s32.totalorder %s21, 0
      %s315 = scalar_select %p314, %s21, 0
      %s316 = smul.addr %s315, 8
      %s317 = scalar_lea.vmem %s3, %s316
      %p318 = scmp.lt.s32.totalorder %s22, 1
      %s319 = scalar_select %p318, %s22, 1
      %p320 = scmp.lt.s32.totalorder %s21, 0
      %s321 = scalar_select %p320, %s21, 0
      %s322 = sadd.s32 %s321, %s319
      %s323 = smul.addr %s322, 8
      %s324 = scalar_lea.vmem %s4, %s323
      %p325 = scmp.lt.s32.totalorder %s22, 1
      %s326 = scalar_select %p325, %s22, 1
      %p327 = scmp.lt.s32.totalorder %s21, 0
      %s328 = scalar_select %p327, %s21, 0
      %s329 = sadd.s32 %s328, %s326
      %s330 = smul.addr %s329, 8
      %s331 = scalar_lea.vmem %s5, %s330
      %v332 = vld [vmem:[%s302] sm:$0x1]
      %v333 = vld [vmem:[%s309] sm:$0x1]
      %v334 = vld [vmem:[%s313] sm:$0xff]
      %v335 = vld [vmem:[%s317] sm:$0xff]
      %v336 = vlaneseq
      %v337 = vshrl.u32 %v336, 7
      %v338 = vsub.s32 0, %v337
      %v339 = vrot.slane %v332, %v338
      %v340 = vmul.f32 %v339, %v334
      %v341 = vlaneseq
      %v342 = vshrl.u32 %v341, 7
      %v343 = vsub.s32 0, %v342
      %v344 = vrot.slane %v333, %v343
      %v345 = vmul.f32 %v344, %v335
      %v346 = vsub.f32 %v340, %v345
      %v347 = vadd.f32 %v346, 0.0
      %v348 = vmul.f32 %v339, %v335
      %v349 = vmul.f32 %v344, %v334
      %v350 = vadd.f32 %v348, %v349
      %v351 = vadd.f32 %v350, 0.0
      %v352 = vld [vmem:[%s302 + $0x1] sm:$0x1]
      %v353 = vld [vmem:[%s309 + $0x1] sm:$0x1]
      %s354 = scalar_lea.vmem %s313, 8
      %v355 = vld [vmem:[%s354] sm:$0xff]
      %s356 = scalar_lea.vmem %s317, 8
      %v357 = vld [vmem:[%s356] sm:$0xff]
      %v358 = vlaneseq
      %v359 = vshrl.u32 %v358, 7
      %v360 = vsub.s32 0, %v359
      %v361 = vrot.slane %v352, %v360
      %v362 = vmul.f32 %v361, %v355
      %v363 = vlaneseq
      %v364 = vshrl.u32 %v363, 7
      %v365 = vsub.s32 0, %v364
      %v366 = vrot.slane %v353, %v365
      %v367 = vmul.f32 %v366, %v357
      %v368 = vsub.f32 %v362, %v367
      %v369 = vadd.f32 %v347, %v368
      %v370 = vmul.f32 %v361, %v357
      %v371 = vmul.f32 %v366, %v355
      %v372 = vadd.f32 %v370, %v371
      %v373 = vadd.f32 %v351, %v372
      %v374 = vld [vmem:[%s302 + $0x2] sm:$0x1]
      %v375 = vld [vmem:[%s309 + $0x2] sm:$0x1]
      %s376 = scalar_lea.vmem %s313, 16
      %v377 = vld [vmem:[%s376] sm:$0xff]
      %s378 = scalar_lea.vmem %s317, 16
      %v379 = vld [vmem:[%s378] sm:$0xff]
      %v380 = vlaneseq
      %v381 = vshrl.u32 %v380, 7
      %v382 = vsub.s32 0, %v381
      %v383 = vrot.slane %v374, %v382
      %v384 = vmul.f32 %v383, %v377
      %v385 = vlaneseq
      %v386 = vshrl.u32 %v385, 7
      %v387 = vsub.s32 0, %v386
      %v388 = vrot.slane %v375, %v387
      %v389 = vmul.f32 %v388, %v379
      %v390 = vsub.f32 %v384, %v389
      %v391 = vadd.f32 %v369, %v390
      %v392 = vmul.f32 %v383, %v379
      %v393 = vmul.f32 %v388, %v377
      %v394 = vadd.f32 %v392, %v393
      %v395 = vadd.f32 %v373, %v394
      %v396 = vld [vmem:[%s302 + $0x3] sm:$0x1]
      %v397 = vld [vmem:[%s309 + $0x3] sm:$0x1]
      %s398 = scalar_lea.vmem %s313, 24
      %v399 = vld [vmem:[%s398] sm:$0xff]
      %s400 = scalar_lea.vmem %s317, 24
      %v401 = vld [vmem:[%s400] sm:$0xff]
      %v402 = vlaneseq
      %v403 = vshrl.u32 %v402, 7
      %v404 = vsub.s32 0, %v403
      %v405 = vrot.slane %v396, %v404
      %v406 = vmul.f32 %v405, %v399
      %v407 = vlaneseq
      %v408 = vshrl.u32 %v407, 7
      %v409 = vsub.s32 0, %v408
      %v410 = vrot.slane %v397, %v409
      %v411 = vmul.f32 %v410, %v401
      %v412 = vsub.f32 %v406, %v411
      %v413 = vadd.f32 %v391, %v412
      %v414 = vmul.f32 %v405, %v401
      %v415 = vmul.f32 %v410, %v399
      %v416 = vadd.f32 %v414, %v415
      %v417 = vadd.f32 %v395, %v416
      %418 = vst [vmem:[%s324] sm:$0xff] %v413
      %419 = vst [vmem:[%s331] sm:$0xff] %v417
      %p420 = scmp.lt.s32.totalorder %s22, 1
      %s421 = scalar_select %p420, %s22, 1
      %p422 = scmp.lt.s32.totalorder %s21, 0
      %s423 = scalar_select %p422, %s21, 0
      %s424 = sadd.s32 %s423, %s421
      %s425 = smul.addr %s424, 8
      %s426 = scalar_lea.vmem %s4, %s425
      %p427 = scmp.lt.s32.totalorder %s22, 1
      %s428 = scalar_select %p427, %s22, 1
      %p429 = scmp.lt.s32.totalorder %s21, 0
      %s430 = scalar_select %p429, %s21, 0
      %s431 = sadd.s32 %s430, %s428
      %s432 = smul.addr %s431, 8
      %s433 = scalar_lea.vmem %s5, %s432
      // Predicated region
      $region37: #{fno_block_forward.2} parent=35 // pred_check
        %p434 = pneg %p157
      $region38: #{fno_block_forward.2} parent=35 // pred_check_branch
        %436 = sbr.rel (%p434) target = $region40
      $region39: #{fno_block_forward.2} parent=35 // pred_region
        _
      $region40: #{fno_block_forward.2} parent=35 // pred_fallthru
        _
      // Predicated region
      $region41: #{fno_block_forward.2} parent=35 // pred_check
        %p437 = pneg %p185
      $region42: #{fno_block_forward.2} parent=35 // pred_check_branch
        %439 = sbr.rel (%p437) target = $region44
      $region43: #{fno_block_forward.2} parent=35 // pred_region
        _
      $region44: #{fno_block_forward.2} parent=35 // pred_fallthru
        _
    $region36: #{fno_block_forward.2} parent=5 // pred_fallthru
      _
    %p440 = scmp.le.s32.totalorder 2, %s12
    // Predicated region
    $region45: #{fno_block_forward.2} parent=5 // pred_check
      %p441 = pneg %p440
    $region46: #{fno_block_forward.2} parent=5 // pred_check_branch
      %443 = sbr.rel (%p441) target = $region48
    $region47: #{fno_block_forward.2} parent=5 // pred_region
      %s444 = ssub.s32 %s12, 2
      // Predicated region
      $region49: #{fno_block_forward.2} parent=47 // pred_check
        %p445 = pneg %p163
      $region50: #{fno_block_forward.2} parent=47 // pred_check_branch
        %447 = sbr.rel (%p445) target = $region52
      $region51: #{fno_block_forward.2} parent=47 // pred_region
        %p448 = scmp.lt.s32.totalorder %s24, 1
        %s449 = scalar_select %p448, %s24, 1
        %p450 = scmp.lt.s32.totalorder %s23, 0
        %s451 = scalar_select %p450, %s23, 0
        %s452 = sadd.s32 %s451, %s449
        %s453 = smul.addr %s452, 8
        %s454 = scalar_lea.vmem %s4, %s453
      $region52: #{fno_block_forward.2} parent=47 // pred_fallthru
        _
      // Predicated region
      $region53: #{fno_block_forward.2} parent=47 // pred_check
        %p455 = pneg %p191
      $region54: #{fno_block_forward.2} parent=47 // pred_check_branch
        %457 = sbr.rel (%p455) target = $region56
      $region55: #{fno_block_forward.2} parent=47 // pred_region
        %p458 = scmp.lt.s32.totalorder %s24, 1
        %s459 = scalar_select %p458, %s24, 1
        %p460 = scmp.lt.s32.totalorder %s23, 0
        %s461 = scalar_select %p460, %s23, 0
        %s462 = sadd.s32 %s461, %s459
        %s463 = smul.addr %s462, 8
        %s464 = scalar_lea.vmem %s5, %s463
      $region56: #{fno_block_forward.2} parent=47 // pred_fallthru
        _
    $region48: #{fno_block_forward.2} parent=5 // pred_fallthru
      _
  $region6: #{fno_block_forward.2} parent=0 // loop_footer
    %s16 = sadd.s32 1, %s12
  $region7: #{fno_block_forward.2} parent=0 // loop_footer_branch
    %11 = sbr.rel target = $region3
  $region8: #{fno_block_forward.2} parent=0 // loop_exit
    _

// kernel: reverse.0
$region0: #{reverse.0}
  %s0 = inlined_call_operand.vmem [shape: f32[2,4,16,7], index: 0, kind: input, shape index: {}]
  %s1 = inlined_call_operand.vmem [shape: f32[2,4,16,7], index: 1, kind: output, shape index: {}]
  $region1: #{reverse.0} parent=0
    #allocation0 [shape = 'u8[65536]{0}', space=vmem, size = 0x10000, scoped, tag = 'operand span for operand 0']
    #allocation1 [shape = 'u8[32768]{0}', space=vmem, size = 0x8000, scoped, tag = 'operand span for operand 1']
    %s2 = scalar_lea.vmem [#allocation0], 8
    // Predicated region
    $region2: #{reverse.0} parent=1 // pred_check
      _
    $region3: #{reverse.0} parent=1 // pred_check_branch
      %4 = sbr.rel (0) target = $region5
    $region4: #{reverse.0} parent=1 // pred_region
      // Predicated region
      $region6: #{reverse.0} parent=4 // pred_check
        _
      $region7: #{reverse.0} parent=4 // pred_check_branch
        %6 = sbr.rel (0) target = $region9
      $region8: #{reverse.0} parent=4 // pred_region
        // Predicated region
        $region21: #{reverse.0} parent=8 // pred_check
          _
        $region22: #{reverse.0} parent=8 // pred_check_branch
          %35 = sbr.rel (0) target = $region24
        $region23: #{reverse.0} parent=8 // pred_region
          loop: start=0, step=1, limit=1
          $region25: #{reverse.0} parent=23 // loop_pre_header
            _
          $region26: #{reverse.0} parent=23 // loop_header
            %s37 = sphi 0, %s41
            %p38 = scmp.ge.s32.totalorder %s37, 1
            %s42 = sphi %s0, %s0
            %s43 = sphi %s2, %s2
          $region27: #{reverse.0} parent=23 // loop_header_branch
            %40 = sbr.rel (%p38) target = $region31
          $region28: #{reverse.0} parent=23 // loop_body
            %v44 = vld [vmem:[%s42] sm:$0xff]
            %45 = vst [vmem:[%s43] sm:$0xff] %v44
            %v46 = vld [vmem:[%s42 + $0x8] sm:$0xff]
            %47 = vst [vmem:[%s43 + $0x10] sm:$0xff] %v46
            %v48 = vld [vmem:[%s42 + $0x10] sm:$0xff]
            %49 = vst [vmem:[%s43 + $0x20] sm:$0xff] %v48
            %v50 = vld [vmem:[%s42 + $0x18] sm:$0xff]
            %51 = vst [vmem:[%s43 + $0x30] sm:$0xff] %v50
            %v52 = vld [vmem:[%s42 + $0x20] sm:$0xff]
            %53 = vst [vmem:[%s43 + $0x40] sm:$0xff] %v52
            %v54 = vld [vmem:[%s42 + $0x28] sm:$0xff]
            %55 = vst [vmem:[%s43 + $0x50] sm:$0xff] %v54
            %v56 = vld [vmem:[%s42 + $0x30] sm:$0xff]
            %57 = vst [vmem:[%s43 + $0x60] sm:$0xff] %v56
            %v58 = vld [vmem:[%s42 + $0x38] sm:$0xff]
            %59 = vst [vmem:[%s43 + $0x70] sm:$0xff] %v58
          $region29: #{reverse.0} parent=23 // loop_footer
            %s41 = sadd.s32 1, %s37
          $region30: #{reverse.0} parent=23 // loop_footer_branch
            %36 = sbr.rel target = $region26
          $region31: #{reverse.0} parent=23 // loop_exit
            _
        $region24: #{reverse.0} parent=8 // pred_fallthru
          _
        // Predicated region
        $region32: #{reverse.0} parent=8 // pred_check
          _
        $region33: #{reverse.0} parent=8 // pred_check_branch
          %61 = sbr.rel target = $region35
        $region34: #{reverse.0} parent=8 // pred_region
          _
        $region35: #{reverse.0} parent=8 // pred_fallthru
          _
      $region9: #{reverse.0} parent=4 // pred_fallthru
        _
      // Predicated region
      $region10: #{reverse.0} parent=4 // pred_check
        _
      $region11: #{reverse.0} parent=4 // pred_check_branch
        %8 = sbr.rel target = $region13
      $region12: #{reverse.0} parent=4 // pred_region
        loop: start=0, step=1, limit=1
        $region14: #{reverse.0} parent=12 // loop_pre_header
          _
        $region15: #{reverse.0} parent=12 // loop_header
          %s11 = sphi 0, %s15
          %p12 = scmp.ge.s32.totalorder %s11, 1
          %s16 = sphi %s0, %s0
          %s17 = sphi %s2, %s2
        $region16: #{reverse.0} parent=12 // loop_header_branch
          %14 = sbr.rel (%p12) target = $region20
        $region17: #{reverse.0} parent=12 // loop_body
          %v18 = vld [vmem:[%s16] sm:$0xff]
          %19 = vst [vmem:[%s17] sm:$0xff] %v18
          %v20 = vld [vmem:[%s16 + $0x8] sm:$0xff]
          %21 = vst [vmem:[%s17 + $0x10] sm:$0xff] %v20
          %v22 = vld [vmem:[%s16 + $0x10] sm:$0xff]
          %23 = vst [vmem:[%s17 + $0x20] sm:$0xff] %v22
          %v24 = vld [vmem:[%s16 + $0x18] sm:$0xff]
          %25 = vst [vmem:[%s17 + $0x30] sm:$0xff] %v24
          %v26 = vld [vmem:[%s16 + $0x20] sm:$0xff]
          %27 = vst [vmem:[%s17 + $0x40] sm:$0xff] %v26
          %v28 = vld [vmem:[%s16 + $0x28] sm:$0xff]
          %29 = vst [vmem:[%s17 + $0x50] sm:$0xff] %v28
          %v30 = vld [vmem:[%s16 + $0x30] sm:$0xff]
          %31 = vst [vmem:[%s17 + $0x60] sm:$0xff] %v30
          %v32 = vld [vmem:[%s16 + $0x38] sm:$0xff]
          %33 = vst [vmem:[%s17 + $0x70] sm:$0xff] %v32
        $region18: #{reverse.0} parent=12 // loop_footer
          %s15 = sadd.s32 1, %s11
        $region19: #{reverse.0} parent=12 // loop_footer_branch
          %10 = sbr.rel target = $region15
        $region20: #{reverse.0} parent=12 // loop_exit
          _
      $region13: #{reverse.0} parent=4 // pred_fallthru
        _
    $region5: #{reverse.0} parent=1 // pred_fallthru
      _
    %62 = vnop
    %s63 = scalar_lea.vmem [#allocation0], 7
    %v64 = vld [vmem:[%s63] ss:$-1 sm:$0xff]
    %v65 = vrot.slane %v64, 1
    %66 = vst [vmem:[#allocation1] sm:$0xff] %v65
    %s67 = scalar_lea.vmem [#allocation0], 8
    %s68 = scalar_lea.vmem %s67, 7 [#allocation0]
    %v69 = vld [vmem:[%s68] ss:$-1 sm:$0xff]
    %v70 = vrot.slane %v69, 1
    %v71 = vlaneseq
    %v72 = vshrl.u32 %v71, 7
    %vm73 = vcmp.lt.s32.totalorder %v72, 7
    %74 = vst.msk [vmem:[#allocation1] sm:$0xff] %vm73, %v70
    %s75 = scalar_lea.vmem [#allocation1], 8
    %s76 = scalar_lea.vmem [#allocation0], 16
    %s77 = scalar_lea.vmem %s76, 7 [#allocation0]
    %v78 = vld [vmem:[%s77] ss:$-1 sm:$0xff]
    %v79 = vrot.slane %v78, 1
    %80 = vst [vmem:[%s75] sm:$0xff] %v79
    %s81 = scalar_lea.vmem %s76, 8 [#allocation0]
    %s82 = scalar_lea.vmem %s81, 7 [#allocation0]
    %v83 = vld [vmem:[%s82] ss:$-1 sm:$0xff]
    %v84 = vrot.slane %v83, 1
    %v85 = vlaneseq
    %v86 = vshrl.u32 %v85, 7
    %vm87 = vcmp.lt.s32.totalorder %v86, 7
    %88 = vst.msk [vmem:[%s75] sm:$0xff] %vm87, %v84
    %s89 = scalar_lea.vmem [#allocation1], 16
    %s90 = scalar_lea.vmem [#allocation0], 32
    %s91 = scalar_lea.vmem %s90, 7 [#allocation0]
    %v92 = vld [vmem:[%s91] ss:$-1 sm:$0xff]
    %v93 = vrot.slane %v92, 1
    %94 = vst [vmem:[%s89] sm:$0xff] %v93
    %s95 = scalar_lea.vmem %s90, 8 [#allocation0]
    %s96 = scalar_lea.vmem %s95, 7 [#allocation0]
    %v97 = vld [vmem:[%s96] ss:$-1 sm:$0xff]
    %v98 = vrot.slane %v97, 1
    %v99 = vlaneseq
    %v100 = vshrl.u32 %v99, 7
    %vm101 = vcmp.lt.s32.totalorder %v100, 7
    %102 = vst.msk [vmem:[%s89] sm:$0xff] %vm101, %v98
    %s103 = scalar_lea.vmem [#allocation1], 24
    %s104 = scalar_lea.vmem [#allocation0], 48
    %s105 = scalar_lea.vmem %s104, 7 [#allocation0]
    %v106 = vld [vmem:[%s105] ss:$-1 sm:$0xff]
    %v107 = vrot.slane %v106, 1
    %108 = vst [vmem:[%s103] sm:$0xff] %v107
    %s109 = scalar_lea.vmem %s104, 8 [#allocation0]
    %s110 = scalar_lea.vmem %s109, 7 [#allocation0]
    %v111 = vld [vmem:[%s110] ss:$-1 sm:$0xff]
    %v112 = vrot.slane %v111, 1
    %v113 = vlaneseq
    %v114 = vshrl.u32 %v113, 7
    %vm115 = vcmp.lt.s32.totalorder %v114, 7
    %116 = vst.msk [vmem:[%s103] sm:$0xff] %vm115, %v112
    %s117 = scalar_lea.vmem [#allocation1], 32
    %s118 = scalar_lea.vmem [#allocation0], 64
    %s119 = scalar_lea.vmem %s118, 7 [#allocation0]
    %v120 = vld [vmem:[%s119] ss:$-1 sm:$0xff]
    %v121 = vrot.slane %v120, 1
    %122 = vst [vmem:[%s117] sm:$0xff] %v121
    %s123 = scalar_lea.vmem %s118, 8 [#allocation0]
    %s124 = scalar_lea.vmem %s123, 7 [#allocation0]
    %v125 = vld [vmem:[%s124] ss:$-1 sm:$0xff]
    %v126 = vrot.slane %v125, 1
    %v127 = vlaneseq
    %v128 = vshrl.u32 %v127, 7
    %vm129 = vcmp.lt.s32.totalorder %v128, 7
    %130 = vst.msk [vmem:[%s117] sm:$0xff] %vm129, %v126
    %s131 = scalar_lea.vmem [#allocation1], 40
    %s132 = scalar_lea.vmem [#allocation0], 80
    %s133 = scalar_lea.vmem %s132, 7 [#allocation0]
    %v134 = vld [vmem:[%s133] ss:$-1 sm:$0xff]
    %v135 = vrot.slane %v134, 1
    %136 = vst [vmem:[%s131] sm:$0xff] %v135
    %s137 = scalar_lea.vmem %s132, 8 [#allocation0]
    %s138 = scalar_lea.vmem %s137, 7 [#allocation0]
    %v139 = vld [vmem:[%s138] ss:$-1 sm:$0xff]
    %v140 = vrot.slane %v139, 1
    %v141 = vlaneseq
    %v142 = vshrl.u32 %v141, 7
    %vm143 = vcmp.lt.s32.totalorder %v142, 7
    %144 = vst.msk [vmem:[%s131] sm:$0xff] %vm143, %v140
    %s145 = scalar_lea.vmem [#allocation1], 48
    %s146 = scalar_lea.vmem [#allocation0], 96
    %s147 = scalar_lea.vmem %s146, 7 [#allocation0]
    %v148 = vld [vmem:[%s147] ss:$-1 sm:$0xff]
    %v149 = vrot.slane %v148, 1
    %150 = vst [vmem:[%s145] sm:$0xff] %v149
    %s151 = scalar_lea.vmem %s146, 8 [#allocation0]
    %s152 = scalar_lea.vmem %s151, 7 [#allocation0]
    %v153 = vld [vmem:[%s152] ss:$-1 sm:$0xff]
    %v154 = vrot.slane %v153, 1
    %v155 = vlaneseq
    %v156 = vshrl.u32 %v155, 7
    %vm157 = vcmp.lt.s32.totalorder %v156, 7
    %158 = vst.msk [vmem:[%s145] sm:$0xff] %vm157, %v154
    %s159 = scalar_lea.vmem [#allocation1], 56
    %s160 = scalar_lea.vmem [#allocation0], 112
    %s161 = scalar_lea.vmem %s160, 7 [#allocation0]
    %v162 = vld [vmem:[%s161] ss:$-1 sm:$0xff]
    %v163 = vrot.slane %v162, 1
    %164 = vst [vmem:[%s159] sm:$0xff] %v163
    %s165 = scalar_lea.vmem %s160, 8 [#allocation0]
    %s166 = scalar_lea.vmem %s165, 7 [#allocation0]
    %v167 = vld [vmem:[%s166] ss:$-1 sm:$0xff]
    %v168 = vrot.slane %v167, 1
    %v169 = vlaneseq
    %v170 = vshrl.u32 %v169, 7
    %vm171 = vcmp.lt.s32.totalorder %v170, 7
    %172 = vst.msk [vmem:[%s159] sm:$0xff] %vm171, %v168
    // Predicated region
    $region36: #{reverse.0} parent=1 // pred_check
      _
    $region37: #{reverse.0} parent=1 // pred_check_branch
      %174 = sbr.rel (0) target = $region39
    $region38: #{reverse.0} parent=1 // pred_region
      // Predicated region
      $region40: #{reverse.0} parent=38 // pred_check
        _
      $region41: #{reverse.0} parent=38 // pred_check_branch
        %176 = sbr.rel (0) target = $region43
      $region42: #{reverse.0} parent=38 // pred_region
        // Predicated region
        $region55: #{reverse.0} parent=42 // pred_check
          _
        $region56: #{reverse.0} parent=42 // pred_check_branch
          %205 = sbr.rel (0) target = $region58
        $region57: #{reverse.0} parent=42 // pred_region
          loop: start=0, step=1, limit=1
          $region59: #{reverse.0} parent=57 // loop_pre_header
            _
          $region60: #{reverse.0} parent=57 // loop_header
            %s207 = sphi 0, %s211
            %p208 = scmp.ge.s32.totalorder %s207, 1
            %s212 = sphi [#allocation1], [#allocation1]
            %s213 = sphi %s1, %s1
          $region61: #{reverse.0} parent=57 // loop_header_branch
            %210 = sbr.rel (%p208) target = $region65
          $region62: #{reverse.0} parent=57 // loop_body
            %v214 = vld [vmem:[%s212] sm:$0xff]
            %215 = vst [vmem:[%s213] sm:$0xff] %v214
            %v216 = vld [vmem:[%s212 + $0x8] sm:$0xff]
            %217 = vst [vmem:[%s213 + $0x8] sm:$0xff] %v216
            %v218 = vld [vmem:[%s212 + $0x10] sm:$0xff]
            %219 = vst [vmem:[%s213 + $0x10] sm:$0xff] %v218
            %v220 = vld [vmem:[%s212 + $0x18] sm:$0xff]
            %221 = vst [vmem:[%s213 + $0x18] sm:$0xff] %v220
            %v222 = vld [vmem:[%s212 + $0x20] sm:$0xff]
            %223 = vst [vmem:[%s213 + $0x20] sm:$0xff] %v222
            %v224 = vld [vmem:[%s212 + $0x28] sm:$0xff]
            %225 = vst [vmem:[%s213 + $0x28] sm:$0xff] %v224
            %v226 = vld [vmem:[%s212 + $0x30] sm:$0xff]
            %227 = vst [vmem:[%s213 + $0x30] sm:$0xff] %v226
            %v228 = vld [vmem:[%s212 + $0x38] sm:$0xff]
            %229 = vst [vmem:[%s213 + $0x38] sm:$0xff] %v228
          $region63: #{reverse.0} parent=57 // loop_footer
            %s211 = sadd.s32 1, %s207
          $region64: #{reverse.0} parent=57 // loop_footer_branch
            %206 = sbr.rel target = $region60
          $region65: #{reverse.0} parent=57 // loop_exit
            _
        $region58: #{reverse.0} parent=42 // pred_fallthru
          _
        // Predicated region
        $region66: #{reverse.0} parent=42 // pred_check
          _
        $region67: #{reverse.0} parent=42 // pred_check_branch
          %231 = sbr.rel target = $region69
        $region68: #{reverse.0} parent=42 // pred_region
          _
        $region69: #{reverse.0} parent=42 // pred_fallthru
          _
      $region43: #{reverse.0} parent=38 // pred_fallthru
        _
      // Predicated region
      $region44: #{reverse.0} parent=38 // pred_check
        _
      $region45: #{reverse.0} parent=38 // pred_check_branch
        %178 = sbr.rel target = $region47
      $region46: #{reverse.0} parent=38 // pred_region
        loop: start=0, step=1, limit=1
        $region48: #{reverse.0} parent=46 // loop_pre_header
          _
        $region49: #{reverse.0} parent=46 // loop_header
          %s181 = sphi 0, %s185
          %p182 = scmp.ge.s32.totalorder %s181, 1
          %s186 = sphi [#allocation1], [#allocation1]
          %s187 = sphi %s1, %s1
        $region50: #{reverse.0} parent=46 // loop_header_branch
          %184 = sbr.rel (%p182) target = $region54
        $region51: #{reverse.0} parent=46 // loop_body
          %v188 = vld [vmem:[%s186] sm:$0xff]
          %189 = vst [vmem:[%s187] sm:$0xff] %v188
          %v190 = vld [vmem:[%s186 + $0x8] sm:$0xff]
          %191 = vst [vmem:[%s187 + $0x8] sm:$0xff] %v190
          %v192 = vld [vmem:[%s186 + $0x10] sm:$0xff]
          %193 = vst [vmem:[%s187 + $0x10] sm:$0xff] %v192
          %v194 = vld [vmem:[%s186 + $0x18] sm:$0xff]
          %195 = vst [vmem:[%s187 + $0x18] sm:$0xff] %v194
          %v196 = vld [vmem:[%s186 + $0x20] sm:$0xff]
          %197 = vst [vmem:[%s187 + $0x20] sm:$0xff] %v196
          %v198 = vld [vmem:[%s186 + $0x28] sm:$0xff]
          %199 = vst [vmem:[%s187 + $0x28] sm:$0xff] %v198
          %v200 = vld [vmem:[%s186 + $0x30] sm:$0xff]
          %201 = vst [vmem:[%s187 + $0x30] sm:$0xff] %v200
          %v202 = vld [vmem:[%s186 + $0x38] sm:$0xff]
          %203 = vst [vmem:[%s187 + $0x38] sm:$0xff] %v202
        $region52: #{reverse.0} parent=46 // loop_footer
          %s185 = sadd.s32 1, %s181
        $region53: #{reverse.0} parent=46 // loop_footer_branch
          %180 = sbr.rel target = $region49
        $region54: #{reverse.0} parent=46 // loop_exit
          _
      $region47: #{reverse.0} parent=38 // pred_fallthru
        _
    $region39: #{reverse.0} parent=1 // pred_fallthru
      _
    %232 = vnop

// kernel: fno_block_forward.3
$region0: #{fno_block_forward.3}
  #allocation0 [shape = 'u32[]', space=smem, size = 0x4, offset = 0x4, fixed_abs, tag = 'smem constant byte address 0x4 - core index']
  #allocation1 [shape = 'u32[144,128]{1,0:T(1,128)}', space=vmem, size = 0x12000, scoped, tag = 'internal scratch']
  %s0 = inlined_call_operand.vmem [shape: f32[2,4,256], index: 0, kind: input, shape index: {}]
  %s1 = inlined_call_operand.vmem [shape: f32[4,4], index: 1, kind: input, shape index: {}]
  %s2 = inlined_call_operand.vmem [shape: f32[4], index: 2, kind: input, shape index: {}]
  %s3 = inlined_call_operand.vmem [shape: f32[2,4,256], index: 3, kind: input, shape index: {}]
  %s4 = inlined_call_operand.vmem [shape: f32[2,4,256], index: 4, kind: output, shape index: {}]
  %s5 = sld [smem:[#allocation0]]
  $region57: #{fno_block_forward.3} parent=0
    _
  %s7 = ssub.s32 1, %s5
  %s8 = scalar_select 0, %s7, %s5
  $region1: #{fno_block_forward.3} parent=0
    #allocation2 [shape = 'u8[2048]{0}', space=smem, size = 0x800, scoped, tag = 'input window, operand 1, single buffered']
    #allocation3 [shape = 's32[2]{0}', space=sflag, size = 0x8, scoped, tag = 'scoped memory for fno_block_forward.3']
    #allocation4 [shape = 'u8[512]{0}', space=smem, size = 0x200, scoped, tag = 'input window, operand 2, single buffered']
    #allocation5 [shape = 's32[1]{0}', space=sflag, size = 0x4, scoped, tag = 'scoped memory for fno_block_forward.3']
    %9 = vsyncpa [#allocation3], 0
    %10 = vsyncpa [#allocation5], 0
    loop: start=0, step=1, limit=4
    $region2: #{fno_block_forward.3} parent=1 // loop_pre_header
      _
    $region3: #{fno_block_forward.3} parent=1 // loop_header
      %s12 = sphi 0, %s16
      %p13 = scmp.ge.s32.totalorder %s12, 4
      %s19 = sphi 0, %s31
      %s20 = sphi 0, %s27
      %s21 = sphi 0, %s19
      %s22 = sphi 0, %s20
      %s23 = sphi 0, %s21
      %s24 = sphi 0, %s22
      %s36 = sphi 0, %s38
      %s39 = sphi 0, %s36
      %s40 = sphi 0, %s39
      %s56 = sphi 0, %s40
      %s60 = sphi 0, %s60
      %s62 = sphi 0, %s60
      %s63 = sphi 0, %s62
      %s77 = sphi 0, %s63
      %s81 = sphi 0, %s81
      %s83 = sphi 0, %s81
      %s84 = sphi 0, %s83
      %s98 = sphi 0, %s84
      %s106 = sphi 0, %s108
      %s109 = sphi 0, %s106
      %s110 = sphi 0, %s109
      %s126 = sphi 0, %s110
      %s134 = sphi 0, %s136
      %s137 = sphi 0, %s134
      %s138 = sphi 0, %s137
      %s154 = sphi 0, %s138
    $region4: #{fno_block_forward.3} parent=1 // loop_header_branch
      %15 = sbr.rel (%p13) target = $region8
    $region5: #{fno_block_forward.3} parent=1 // loop_body
      %s17 = ssub.s32 %s12, 1
      %s18 = ssub.s32 %s12, 2
      %s25 = sadd.s32 1, %s20
      %p26 = scmp.ge.s32.totalorder %s25, 1
      %s27 = scalar_select %p26, 0, %s25
      %s28 = sadd.s32 1, %s19
      %s29 = scalar_select %p26, %s28, %s19
      %p30 = scmp.ge.s32.totalorder %s29, 2
      %s31 = scalar_select %p30, 0, %s29
      %s32 = ssub.s32 %s19, %s31
      %s33 = ssub.s32 %s20, %s27
      %s34 = sor.u32 %s32, %s33
      %p35 = scmp.eq.s32.totalorder %s34, 0
      %s37 = sadd.s32 %s36, 1
      %s38 = scalar_select %p35, %s36, %s37
      %p41 = pneg %p35
      %p42 = scmp.eq.s32.totalorder %s12, 1
      %p43 = por %p41, %p42
      %p44 = scmp.ne.s32.totalorder %s36, %s39
      %p45 = scmp.eq.s32.totalorder %s12, 0
      %p46 = por %p44, %p45
      %p47 = scmp.ne.s32.totalorder %s36, %s39
      %p48 = scmp.eq.s32.totalorder %s17, 1
      %p49 = por %p47, %p48
      %p50 = scmp.ne.s32.totalorder %s39, %s40
      %p51 = scmp.eq.s32.totalorder %s17, 0
      %p52 = por %p50, %p51
      %p53 = scmp.ne.s32.totalorder %s39, %s40
      %p54 = scmp.eq.s32.totalorder %s18, 1
      %p55 = por %p53, %p54
      %p57 = scmp.ne.s32.totalorder %s40, %s56
      %p58 = scmp.eq.s32.totalorder %s18, 0
      %p59 = por %p57, %p58
      %s61 = sadd.s32 %s60, 1
      %p64 = scmp.eq.s32.totalorder %s12, 1
      %p65 = scmp.ne.s32.totalorder %s60, %s62
      %p66 = scmp.eq.s32.totalorder %s12, 0
      %p67 = por %p65, %p66
      %p68 = scmp.ne.s32.totalorder %s60, %s62
      %p69 = scmp.eq.s32.totalorder %s17, 1
      %p70 = por %p68, %p69
      %p71 = scmp.ne.s32.totalorder %s62, %s63
      %p72 = scmp.eq.s32.totalorder %s17, 0
      %p73 = por %p71, %p72
      %p74 = scmp.ne.s32.totalorder %s62, %s63
      %p75 = scmp.eq.s32.totalorder %s18, 1
      %p76 = por %p74, %p75
      %p78 = scmp.ne.s32.totalorder %s63, %s77
      %p79 = scmp.eq.s32.totalorder %s18, 0
      %p80 = por %p78, %p79
      %s82 = sadd.s32 %s81, 1
      %p85 = scmp.eq.s32.totalorder %s12, 1
      %p86 = scmp.ne.s32.totalorder %s81, %s83
      %p87 = scmp.eq.s32.totalorder %s12, 0
      %p88 = por %p86, %p87
      %p89 = scmp.ne.s32.totalorder %s81, %s83
      %p90 = scmp.eq.s32.totalorder %s17, 1
      %p91 = por %p89, %p90
      %p92 = scmp.ne.s32.totalorder %s83, %s84
      %p93 = scmp.eq.s32.totalorder %s17, 0
      %p94 = por %p92, %p93
      %p95 = scmp.ne.s32.totalorder %s83, %s84
      %p96 = scmp.eq.s32.totalorder %s18, 1
      %p97 = por %p95, %p96
      %p99 = scmp.ne.s32.totalorder %s84, %s98
      %p100 = scmp.eq.s32.totalorder %s18, 0
      %p101 = por %p99, %p100
      %s102 = ssub.s32 %s19, %s31
      %s103 = ssub.s32 %s20, %s27
      %s104 = sor.u32 %s102, %s103
      %p105 = scmp.eq.s32.totalorder %s104, 0
      %s107 = sadd.s32 %s106, 1
      %s108 = scalar_select %p105, %s106, %s107
      %p111 = pneg %p105
      %p112 = scmp.eq.s32.totalorder %s12, 1
      %p113 = por %p111, %p112
      %p114 = scmp.ne.s32.totalorder %s106, %s109
      %p115 = scmp.eq.s32.totalorder %s12, 0
      %p116 = por %p114, %p115
      %p117 = scmp.ne.s32.totalorder %s106, %s109
      %p118 = scmp.eq.s32.totalorder %s17, 1
      %p119 = por %p117, %p118
      %p120 = scmp.ne.s32.totalorder %s109, %s110
      %p121 = scmp.eq.s32.totalorder %s17, 0
      %p122 = por %p120, %p121
      %p123 = scmp.ne.s32.totalorder %s109, %s110
      %p124 = scmp.eq.s32.totalorder %s18, 1
      %p125 = por %p123, %p124
      %p127 = scmp.ne.s32.totalorder %s110, %s126
      %p128 = scmp.eq.s32.totalorder %s18, 0
      %p129 = por %p127, %p128
      %s130 = ssub.s32 %s19, %s31
      %s131 = ssub.s32 %s20, %s27
      %s132 = sor.u32 %s130, %s131
      %p133 = scmp.eq.s32.totalorder %s132, 0
      %s135 = sadd.s32 %s134, 1
      %s136 = scalar_select %p133, %s134, %s135
      %p139 = pneg %p133
      %p140 = scmp.eq.s32.totalorder %s12, 1
      %p141 = por %p139, %p140
      %p142 = scmp.ne.s32.totalorder %s134, %s137
      %p143 = scmp.eq.s32.totalorder %s12, 0
      %p144 = por %p142, %p143
      %p145 = scmp.ne.s32.totalorder %s134, %s137
      %p146 = scmp.eq.s32.totalorder %s17, 1
      %p147 = por %p145, %p146
      %p148 = scmp.ne.s32.totalorder %s137, %s138
      %p149 = scmp.eq.s32.totalorder %s17, 0
      %p150 = por %p148, %p149
      %p151 = scmp.ne.s32.totalorder %s137, %s138
      %p152 = scmp.eq.s32.totalorder %s18, 1
      %p153 = por %p151, %p152
      %p155 = scmp.ne.s32.totalorder %s138, %s154
      %p156 = scmp.eq.s32.totalorder %s18, 0
      %p157 = por %p155, %p156
      %p158 = scmp.le.s32.totalorder 1, %s12
      %p159 = scmp.lt.s32.totalorder %s12, 3
      %p160 = pnand %p158, %p159
      %p161 = pneg %p160
      // Predicated region
      $region9: #{fno_block_forward.3} parent=5 // pred_check
        _
      $region10: #{fno_block_forward.3} parent=5 // pred_check_branch
        %163 = sbr.rel (%p160) target = $region12
      $region11: #{fno_block_forward.3} parent=5 // pred_region
        %s164 = ssub.s32 %s12, 1
        // Predicated region
        $region13: #{fno_block_forward.3} parent=11 // pred_check
          %p165 = pneg %p73
        $region14: #{fno_block_forward.3} parent=11 // pred_check_branch
          %167 = sbr.rel (%p165) target = $region16
        $region15: #{fno_block_forward.3} parent=11 // pred_region
          %s169 = ssub.s32 64, 64
          %170 = vsyncadd [#allocation3], %s169
          %s172 = sshll.u32 %s1, 4
          %s173 = int_to_ptr.vmem [resolvable:$true] %s172
          %175 = dma.vmem_to_smem %s173, 64, [#allocation2], [#allocation3]
        $region16: #{fno_block_forward.3} parent=11 // pred_fallthru
          _
        // Predicated region
        $region17: #{fno_block_forward.3} parent=11 // pred_check
          %p176 = pneg %p94
        $region18: #{fno_block_forward.3} parent=11 // pred_check_branch
          %178 = sbr.rel (%p176) target = $region20
        $region19: #{fno_block_forward.3} parent=11 // pred_region
          %s180 = ssub.s32 16, 16
          %181 = vsyncadd [#allocation5], %s180
          %s183 = sshll.u32 %s2, 4
          %s184 = int_to_ptr.vmem [resolvable:$true] %s183
          %186 = dma.vmem_to_smem %s184, 16, [#allocation4], [#allocation5]
        $region20: #{fno_block_forward.3} parent=11 // pred_fallthru
          _
      $region12: #{fno_block_forward.3} parent=5 // pred_fallthru
        _
      %p187 = scmp.lt.s32.totalorder %s12, 2
      // Predicated region
      $region21: #{fno_block_forward.3} parent=5 // pred_check
        %p188 = pneg %p187
      $region22: #{fno_block_forward.3} parent=5 // pred_check_branch
        %190 = sbr.rel (%p188) target = $region24
      $region23: #{fno_block_forward.3} parent=5 // pred_region
        // Predicated region
        $region25: #{fno_block_forward.3} parent=23 // pred_check
          %p191 = pneg %p46
        $region26: #{fno_block_forward.3} parent=23 // pred_check_branch
          %193 = sbr.rel (%p191) target = $region28
        $region27: #{fno_block_forward.3} parent=23 // pred_region
          %s194 = smul.u32 2, %s20
          %p195 = scmp.lt.s32.totalorder %s19, 1
          %s196 = scalar_select %p195, %s19, 1
          %p197 = scmp.lt.s32.totalorder %s194, 1
          %s198 = scalar_select %p197, %s194, 1
          %s199 = smul.addr %s196, 2
          %s200 = sadd.s32 %s198, %s199
          %s201 = smul.addr %s200, 4
          %s202 = scalar_lea.vmem %s0, %s201
          %s203 = smul.u32 2, %s20
        $region28: #{fno_block_forward.3} parent=23 // pred_fallthru
          _
        // Predicated region
        $region29: #{fno_block_forward.3} parent=23 // pred_check
          %p204 = pneg %p116
        $region30: #{fno_block_forward.3} parent=23 // pred_check_branch
          %206 = sbr.rel (%p204) target = $region32
        $region31: #{fno_block_forward.3} parent=23 // pred_region
          %s207 = smul.u32 2, %s20
          %p208 = scmp.lt.s32.totalorder %s19, 1
          %s209 = scalar_select %p208, %s19, 1
          %p210 = scmp.lt.s32.totalorder %s207, 1
          %s211 = scalar_select %p210, %s207, 1
          %s212 = smul.addr %s209, 2
          %s213 = sadd.s32 %s211, %s212
          %s214 = smul.addr %s213, 4
          %s215 = scalar_lea.vmem %s3, %s214
          %s216 = smul.u32 2, %s20
        $region32: #{fno_block_forward.3} parent=23 // pred_fallthru
          _
      $region24: #{fno_block_forward.3} parent=5 // pred_fallthru
        _
      %p217 = scmp.le.s32.totalorder 1, %s12
      %p218 = scmp.lt.s32.totalorder %s12, 3
      %p219 = pnand %p217, %p218
      %p220 = pneg %p219
      // Predicated region
      $region33: #{fno_block_forward.3} parent=5 // pred_check
        _
      $region34: #{fno_block_forward.3} parent=5 // pred_check_branch
        %222 = sbr.rel (%p219) target = $region36
      $region35: #{fno_block_forward.3} parent=5 // pred_region
        %s223 = ssub.s32 %s12, 1
        // Predicated region
        $region37: #{fno_block_forward.3} parent=35 // pred_check
          %p224 = pneg %p73
        $region38: #{fno_block_forward.3} parent=35 // pred_check_branch
          %226 = sbr.rel (%p224) target = $region40
        $region39: #{fno_block_forward.3} parent=35 // pred_region
          %227 = dma.done [#allocation3], 64
        $region40: #{fno_block_forward.3} parent=35 // pred_fallthru
          _
        // Predicated region
        $region41: #{fno_block_forward.3} parent=35 // pred_check
          %p228 = pneg %p94
        $region42: #{fno_block_forward.3} parent=35 // pred_check_branch
          %230 = sbr.rel (%p228) target = $region44
        $region43: #{fno_block_forward.3} parent=35 // pred_region
          %231 = dma.done [#allocation5], 16
        $region44: #{fno_block_forward.3} parent=35 // pred_fallthru
          _
        %232 = sfence
        %s233 = smul.u32 2, %s22
        %p234 = scmp.lt.s32.totalorder %s21, 1
        %s235 = scalar_select %p234, %s21, 1
        %p236 = scmp.lt.s32.totalorder %s233, 1
        %s237 = scalar_select %p236, %s233, 1
        %s238 = smul.addr %s235, 2
        %s239 = sadd.s32 %s237, %s238
        %s240 = smul.addr %s239, 4
        %s241 = scalar_lea.vmem %s0, %s240
        %p242 = pneg %p52
        %p243 = pneg %p49
        %p244 = pneg %p73
        %p245 = pneg %p70
        %p246 = pneg %p94
        %p247 = pneg %p91
        %s248 = smul.u32 2, %s22
        %p249 = scmp.lt.s32.totalorder %s21, 1
        %s250 = scalar_select %p249, %s21, 1
        %p251 = scmp.lt.s32.totalorder %s248, 1
        %s252 = scalar_select %p251, %s248, 1
        %s253 = smul.addr %s250, 2
        %s254 = sadd.s32 %s252, %s253
        %s255 = smul.addr %s254, 4
        %s256 = scalar_lea.vmem %s3, %s255
        %p257 = pneg %p122
        %p258 = pneg %p119
        %p259 = pneg %p150
        %p260 = pneg %p147
        %s261 = smul.u32 2, %s22
        %p262 = scmp.lt.s32.totalorder %s21, 1
        %s263 = scalar_select %p262, %s21, 1
        %p264 = scmp.lt.s32.totalorder %s261, 1
        %s265 = scalar_select %p264, %s261, 1
        %s266 = smul.addr %s263, 2
        %s267 = sadd.s32 %s265, %s266
        %s268 = smul.addr %s267, 4
        %s269 = scalar_lea.vmem %s4, %s268
        %s270 = smul.u32 2, %s22
        %p271 = scmp.lt.s32.totalorder %s21, 1
        %s272 = scalar_select %p271, %s21, 1
        %p273 = scmp.lt.s32.totalorder %s270, 1
        %s274 = scalar_select %p273, %s270, 1
        %s275 = smul.addr %s272, 2
        %s276 = sadd.s32 %s274, %s275
        %s277 = smul.addr %s276, 4
        %s278 = scalar_lea.vmem %s0, %s277
        %s279 = smul.u32 2, %s22
        %s280 = smul.u32 2, %s22
        %p281 = scmp.lt.s32.totalorder %s21, 1
        %s282 = scalar_select %p281, %s21, 1
        %p283 = scmp.lt.s32.totalorder %s280, 1
        %s284 = scalar_select %p283, %s280, 1
        %s285 = smul.addr %s282, 2
        %s286 = sadd.s32 %s284, %s285
        %s287 = smul.addr %s286, 4
        %s288 = scalar_lea.vmem %s3, %s287
        %s289 = smul.u32 2, %s22
        %s290 = smul.u32 2, %s22
        %p291 = scmp.lt.s32.totalorder %s21, 1
        %s292 = scalar_select %p291, %s21, 1
        %p293 = scmp.lt.s32.totalorder %s290, 1
        %s294 = scalar_select %p293, %s290, 1
        %s295 = smul.addr %s292, 2
        %s296 = sadd.s32 %s294, %s295
        %s297 = smul.addr %s296, 4
        %s298 = scalar_lea.vmem %s4, %s297
        %s299 = smul.u32 2, %s22
        %v300 = vld [vmem:[%s278] ss:$4 sm:$0x3]
        %s301 = scalar_lea.vmem %s278, 1
        %v302 = vld [vmem:[%s301] ss:$4 sm:$0x3]
        %s303 = scalar_lea.vmem %s278, 2
        %v304 = vld [vmem:[%s303] ss:$4 sm:$0x3]
        %s305 = scalar_lea.vmem %s278, 3
        %v306 = vld [vmem:[%s305] ss:$4 sm:$0x3]
        %v307 = vld [vmem:[%s288] ss:$4 sm:$0x3]
        %s308 = sld [smem:[#allocation4]]
        %v309 = vstv %s308
        %v310 = vadd.f32 %v307, %v309
        %s311 = sld [smem:[#allocation2]]
        %v312 = vstv %s311
        %v313 = vmul.f32 %v300, %v312
        %v314 = vadd.f32 %v310, %v313
        %s315 = sld [smem:[#allocation2 + $0x1]]
        %v316 = vstv %s315
        %v317 = vmul.f32 %v302, %v316
        %v318 = vadd.f32 %v314, %v317
        %s319 = sld [smem:[#allocation2 + $0x2]]
        %v320 = vstv %s319
        %v321 = vmul.f32 %v304, %v320
        %v322 = vadd.f32 %v318, %v321
        %s323 = sld [smem:[#allocation2 + $0x3]]
        %v324 = vstv %s323
        %v325 = vmul.f32 %v306, %v324
        %v326 = vadd.f32 %v322, %v325
        %v327 = vlaneseq
        %vm328 = vcmp.ge.s32.totalorder %v327, 0
        %vm329 = vcmp.lt.s32.totalorder %v327, 256
        %vm330 = vmand %vm328, %vm329
        %331 = vst.msk [vmem:[%s298] ss:$4 sm:$0x3] %vm330, %v326
        %s332 = scalar_lea.vmem %s288, 1
        %v333 = vld [vmem:[%s332] ss:$4 sm:$0x3]
        %s334 = sld [smem:[#allocation4 + $0x1]]
        %v335 = vstv %s334
        %v336 = vadd.f32 %v333, %v335
        %s337 = sld [smem:[#allocation2 + $0x80]]
        %v338 = vstv %s337
        %v339 = vmul.f32 %v300, %v338
        %v340 = vadd.f32 %v336, %v339
        %s341 = sld [smem:[#allocation2 + $0x81]]
        %v342 = vstv %s341
        %v343 = vmul.f32 %v302, %v342
        %v344 = vadd.f32 %v340, %v343
        %s345 = sld [smem:[#allocation2 + $0x82]]
        %v346 = vstv %s345
        %v347 = vmul.f32 %v304, %v346
        %v348 = vadd.f32 %v344, %v347
        %s349 = sld [smem:[#allocation2 + $0x83]]
        %v350 = vstv %s349
        %v351 = vmul.f32 %v306, %v350
        %v352 = vadd.f32 %v348, %v351
        %s353 = scalar_lea.vmem %s298, 1
        %354 = vst.msk [vmem:[%s353] ss:$4 sm:$0x3] %vm330, %v352
        %s355 = scalar_lea.vmem %s288, 2
        %v356 = vld [vmem:[%s355] ss:$4 sm:$0x3]
        %s357 = sld [smem:[#allocation4 + $0x2]]
        %v358 = vstv %s357
        %v359 = vadd.f32 %v356, %v358
        %s360 = sld [smem:[#allocation2 + $0x100]]
        %v361 = vstv %s360
        %v362 = vmul.f32 %v300, %v361
        %v363 = vadd.f32 %v359, %v362
        %s364 = sld [smem:[#allocation2 + $0x101]]
        %v365 = vstv %s364
        %v366 = vmul.f32 %v302, %v365
        %v367 = vadd.f32 %v363, %v366
        %s368 = sld [smem:[#allocation2 + $0x102]]
        %v369 = vstv %s368
        %v370 = vmul.f32 %v304, %v369
        %v371 = vadd.f32 %v367, %v370
        %s372 = sld [smem:[#allocation2 + $0x103]]
        %v373 = vstv %s372
        %v374 = vmul.f32 %v306, %v373
        %v375 = vadd.f32 %v371, %v374
        %s376 = scalar_lea.vmem %s298, 2
        %377 = vst.msk [vmem:[%s376] ss:$4 sm:$0x3] %vm330, %v375
        %s378 = scalar_lea.vmem %s288, 3
        %v379 = vld [vmem:[%s378] ss:$4 sm:$0x3]
        %s380 = sld [smem:[#allocation4 + $0x3]]
        %v381 = vstv %s380
        %v382 = vadd.f32 %v379, %v381
        %s383 = sld [smem:[#allocation2 + $0x180]]
        %v384 = vstv %s383
        %v385 = vmul.f32 %v300, %v384
        %v386 = vadd.f32 %v382, %v385
        %s387 = sld [smem:[#allocation2 + $0x181]]
        %v388 = vstv %s387
        %v389 = vmul.f32 %v302, %v388
        %v390 = vadd.f32 %v386, %v389
        %s391 = sld [smem:[#allocation2 + $0x182]]
        %v392 = vstv %s391
        %v393 = vmul.f32 %v304, %v392
        %v394 = vadd.f32 %v390, %v393
        %s395 = sld [smem:[#allocation2 + $0x183]]
        %v396 = vstv %s395
        %v397 = vmul.f32 %v306, %v396
        %v398 = vadd.f32 %v394, %v397
        %s399 = scalar_lea.vmem %s298, 3
        %400 = vst.msk [vmem:[%s399] ss:$4 sm:$0x3] %vm330, %v398
        %s401 = smul.u32 2, %s22
        %p402 = scmp.lt.s32.totalorder %s21, 1
        %s403 = scalar_select %p402, %s21, 1
        %p404 = scmp.lt.s32.totalorder %s401, 1
        %s405 = scalar_select %p404, %s401, 1
        %s406 = smul.addr %s403, 2
        %s407 = sadd.s32 %s405, %s406
        %s408 = smul.addr %s407, 4
        %s409 = scalar_lea.vmem %s4, %s408
        // Predicated region
        $region45: #{fno_block_forward.3} parent=35 // pred_check
          %p410 = pneg %p147
        $region46: #{fno_block_forward.3} parent=35 // pred_check_branch
          %412 = sbr.rel (%p410) target = $region48
        $region47: #{fno_block_forward.3} parent=35 // pred_region
          %s413 = smul.u32 2, %s22
        $region48: #{fno_block_forward.3} parent=35 // pred_fallthru
          _
      $region36: #{fno_block_forward.3} parent=5 // pred_fallthru
        _
      %p414 = scmp.le.s32.totalorder 2, %s12
      // Predicated region
      $region49: #{fno_block_forward.3} parent=5 // pred_check
        %p415 = pneg %p414
      $region50: #{fno_block_forward.3} parent=5 // pred_check_branch
        %417 = sbr.rel (%p415) target = $region52
      $region51: #{fno_block_forward.3} parent=5 // pred_region
        %s418 = ssub.s32 %s12, 2
        // Predicated region
        $region53: #{fno_block_forward.3} parent=51 // pred_check
          %p419 = pneg %p153
        $region54: #{fno_block_forward.3} parent=51 // pred_check_branch
          %421 = sbr.rel (%p419) target = $region56
        $region55: #{fno_block_forward.3} parent=51 // pred_region
          %s422 = smul.u32 2, %s24
          %p423 = scmp.lt.s32.totalorder %s23, 1
          %s424 = scalar_select %p423, %s23, 1
          %p425 = scmp.lt.s32.totalorder %s422, 1
          %s426 = scalar_select %p425, %s422, 1
          %s427 = smul.addr %s424, 2
          %s428 = sadd.s32 %s426, %s427
          %s429 = smul.addr %s428, 4
          %s430 = scalar_lea.vmem %s4, %s429
        $region56: #{fno_block_forward.3} parent=51 // pred_fallthru
          _
      $region52: #{fno_block_forward.3} parent=5 // pred_fallthru
        _
    $region6: #{fno_block_forward.3} parent=1 // loop_footer
      %s16 = sadd.s32 1, %s12
    $region7: #{fno_block_forward.3} parent=1 // loop_footer_branch
      %11 = sbr.rel target = $region3
    $region8: #{fno_block_forward.3} parent=1 // loop_exit
      _
    %431 = vsyncpa [#allocation3], 1
    %s432 = scalar_lea.sflag [#allocation3], 1
    %433 = vsyncpa %s432, 1
    %434 = vsyncpa [#allocation5], 1

</llo_original>
